<compile_context>
chip_gen: v6e
topology: v6e:2x2x1
jax: 0.10.0
libtpu: 0.0.40
codegen_flags: <defaults>
</compile_context>

<pallas_src>
import functools

import jax
import jax.numpy as jnp
from jax.experimental import pallas as pl
from jax.experimental.pallas import tpu as pltpu

LANE = 128


def _round_up(v, m):
    return (v + m - 1) // m * m


def _hgx_fused_kernel(x_ref, h_ref, dinv_ref, binv_ref, *rest, num_layers):
    """Fused HyperGraphX forward (num_layers HypergraphConv layers).

    x_ref:    [N, F0]  node features (bf16, zero-padded)
    h_ref:    [N, M]   incidence matrix (bf16, 0/1, zero-padded)
    dinv_ref: [N, 1]   D^{-1} node-degree inverses (f32, 0 for isolated nodes)
    binv_ref: [M, 1]   B^{-1} edge-degree inverses (f32, 0 for empty edges)
    rest:     (w_0, b_0, ..., w_{L-1}, b_{L-1}, o_ref)
              w_l: [F_l, F_{l+1}] bf16, b_l: [1, F_{l+1}] f32
    """
    wb = rest[:2 * num_layers]
    o_ref = rest[2 * num_layers]

    h = h_ref[...]                      # [N, M] bf16, resident for all layers
    ht = h.T                            # [M, N] bf16 -- transposed ONCE, reused every layer
    d_inv = dinv_ref[...]               # [N, 1] f32
    b_inv = binv_ref[...]               # [M, 1] f32

    x = x_ref[...]                      # [N, F0] bf16 (already cast in wrapper)

    for layer in range(num_layers):
        w = wb[2 * layer][...]          # [Fin, Fout] bf16
        bias = wb[2 * layer + 1][...]   # [1, Fout]   f32

        # Y = X @ Theta                       (MXU, bf16 in / f32 acc)
        y = jnp.dot(x, w, preferred_element_type=jnp.float32)
        # E = B^{-1} (H^T Y)                  aggregate nodes -> hyperedges
        e = jnp.dot(ht, y.astype(jnp.bfloat16),
                    preferred_element_type=jnp.float32) * b_inv
        # Z = D^{-1} (H E) + bias             scatter hyperedges -> nodes
        z = jnp.dot(h, e.astype(jnp.bfloat16),
                    preferred_element_type=jnp.float32) * d_inv + bias

        if layer < num_layers - 1:
            x = jnp.maximum(z, 0.0).astype(jnp.bfloat16)   # ReLU; next MXU input
        else:
            o_ref[...] = z.astype(o_ref.dtype)             # final layer: no ReLU


def hypergraphx_forward(x, h, params):
    """HyperGraphX.forward in eval mode (dropout = identity), one pallas_call.

    x: [N, nfeat] f32, h: [N, M] f32 (dense 0/1 incidence),
    params: list of (W [fin, fout], b [fout]) per layer.
    """
    n, nfeat = x.shape
    m = h.shape[1]
    num_layers = len(params)

    n_p = _round_up(n, LANE)   # N is a lane / contraction dim of H^T @ Y -> pad to 128
    m_p = _round_up(m, LANE)

    dims = [nfeat] + [w.shape[1] for (w, _) in params]
    dims_p = [_round_up(d, LANE) for d in dims]   # pad to 128, never beyond

    # Zero-pad (exact: padded rows/cols of H, X, Theta contribute nothing and
    # padded node rows are sliced off at the end -- keep this invariant).
    x_p = (jnp.zeros((n_p, dims_p[0]), jnp.float32)
           .at[:n, :nfeat].set(x).astype(jnp.bfloat16))         # bf16 MXU operand
    h_p = jnp.zeros((n_p, m_p), jnp.float32).at[:n, :m].set(h)

    # Layer-invariant degree normalisation, computed once in f32.
    d_deg = jnp.sum(h_p, axis=1, keepdims=True)                 # [Np, 1]
    b_deg = jnp.sum(h_p, axis=0).reshape(m_p, 1)                # [Mp, 1]
    d_inv = jnp.where(d_deg > 0, 1.0 / d_deg, 0.0)
    b_inv = jnp.where(b_deg > 0, 1.0 / b_deg, 0.0)

    h_bf = h_p.astype(jnp.bfloat16)                             # 0/1 -> lossless

    inputs = [x_p, h_bf, d_inv, b_inv]
    for li, (w, b) in enumerate(params):
        fin, fout = w.shape
        fin_p, fout_p = dims_p[li], dims_p[li + 1]
        w_p = (jnp.zeros((fin_p, fout_p), jnp.float32)
               .at[:fin, :fout].set(w).astype(jnp.bfloat16))
        b_p = jnp.zeros((1, fout_p), jnp.float32).at[0, :fout].set(b)
        inputs += [w_p, b_p]

    # Explicit scoped-VMEM budget sized to the real resident working set
    # (v5e default is only 16 MiB); capped at v7x's 64 MiB physical VMEM.
    f_max = max(dims_p)
    resident = sum(int(a.size) * a.dtype.itemsize for a in inputs)
    resident += n_p * dims_p[-1] * 4          # output block (f32)
    resident += m_p * n_p * 2                 # in-kernel H^T (bf16)
    resident += (n_p + m_p) * f_max * 4 * 3   # per-layer Y/E/Z f32 temporaries
    vmem_limit = int(min(max(2 * resident, 32 << 20), 64 << 20))

    out_p = pl.pallas_call(
        functools.partial(_hgx_fused_kernel, num_layers=num_layers),
        out_shape=jax.ShapeDtypeStruct((n_p, dims_p[-1]), jnp.float32),
        # No grid: single step, whole arrays in VMEM, no needless double-buffering.
        in_specs=[pl.BlockSpec(memory_space=pltpu.MemorySpace.VMEM)
                  for _ in inputs],
        out_specs=pl.BlockSpec(memory_space=pltpu.MemorySpace.VMEM),
        compiler_params=pltpu.CompilerParams(vmem_limit_bytes=vmem_limit),
    )(*inputs)

    return out_p[:n, :dims[-1]]


def _reference_forward(x, h, params):
    """Pure-JAX f32 reference of the same forward (eval mode)."""
    d = jnp.sum(h, axis=1, keepdims=True)
    b = jnp.sum(h, axis=0).reshape(-1, 1)
    d_inv = jnp.where(d > 0, 1.0 / d, 0.0)
    b_inv = jnp.where(b > 0, 1.0 / b, 0.0)
    out = x
    num_layers = len(params)
    for i, (w, bias) in enumerate(params):
        y = out @ w
        e = b_inv * (h.T @ y)
        z = d_inv * (h @ e) + bias
        out = jnp.maximum(z, 0.0) if i < num_layers - 1 else z
    return out


def init_params(key, nfeat, nhid, nclass, nlayer=3):
    """Deterministic glorot-style weights, zero biases (matches PyG defaults)."""
    shapes = [(nfeat, nhid)] + [(nhid, nhid)] * (nlayer - 2) + [(nhid, nclass)]
    params = []
    for (fin, fout) in shapes:
        key, sub = jax.random.split(key)
        scale = jnp.sqrt(6.0 / (fin + fout))
        w = jax.random.uniform(sub, (fin, fout), jnp.float32, -scale, scale)
        b = jnp.zeros((fout,), jnp.float32)
        params.append((w, b))
    return params


if __name__ == "__main__":
    key = jax.random.PRNGKey(0)

    N, M = 16, 8              # nodes, hyperedges
    NFEAT, NHID, NCLASS = 8, 32, 4
    NLAYER = 3

    k_x, k_h, k_p = jax.random.split(key, 3)
    x = jax.random.normal(k_x, (N, NFEAT), jnp.float32)
    # dense binary incidence matrix H [N, M]
    h = (jax.random.uniform(k_h, (N, M)) < 0.3).astype(jnp.float32)

    params = init_params(k_p, NFEAT, NHID, NCLASS, NLAYER)

    out = hypergraphx_forward(x, h, params)
    out = jax.block_until_ready(out)

    assert out.shape == (N, NCLASS), out.shape
    assert bool(jnp.all(jnp.isfinite(out)))

    # bf16 MXU inputs / f32 accumulation -> small divergence vs f32 reference.
    ref = _reference_forward(x, h, params)
    max_err = float(jnp.max(jnp.abs(out - ref)))
    assert bool(jnp.allclose(out, ref, rtol=5e-2, atol=5e-2)), max_err

    print("KERNEL_OK")
</pallas_src>

<mosaic_0001>
module attributes {stable_mosaic.version = 11 : i64} {
  func.func @_hgx_fused_kernel(%arg0: memref<128x128xbf16, #tpu.memory_space<vmem>>, %arg1: memref<128x128xbf16, #tpu.memory_space<vmem>>, %arg2: memref<128x1xf32, #tpu.memory_space<vmem>>, %arg3: memref<128x1xf32, #tpu.memory_space<vmem>>, %arg4: memref<128x128xbf16, #tpu.memory_space<vmem>>, %arg5: memref<1x128xf32, #tpu.memory_space<vmem>>, %arg6: memref<128x128xbf16, #tpu.memory_space<vmem>>, %arg7: memref<1x128xf32, #tpu.memory_space<vmem>>, %arg8: memref<128x128xbf16, #tpu.memory_space<vmem>>, %arg9: memref<1x128xf32, #tpu.memory_space<vmem>>, %arg10: memref<128x128xf32, #tpu.memory_space<vmem>>) attributes {dimension_semantics = [], scalar_prefetch = 0 : i64, scratch_operands = 0 : i64, tpu.core_type = #tpu.core_type<tc>} {
    %c0 = arith.constant 0 : index
    %c0_0 = arith.constant 0 : index
    %0 = vector.load %arg1[%c0, %c0_0] : memref<128x128xbf16, #tpu.memory_space<vmem>>, vector<128x128xbf16>
    %1 = tpu.transpose %0, [1, 0] : vector<128x128xbf16> -> vector<128x128xbf16>
    %c0_1 = arith.constant 0 : index
    %c0_2 = arith.constant 0 : index
    %2 = vector.load %arg2[%c0_1, %c0_2] : memref<128x1xf32, #tpu.memory_space<vmem>>, vector<128x1xf32>
    %c0_3 = arith.constant 0 : index
    %c0_4 = arith.constant 0 : index
    %3 = vector.load %arg3[%c0_3, %c0_4] : memref<128x1xf32, #tpu.memory_space<vmem>>, vector<128x1xf32>
    %c0_5 = arith.constant 0 : index
    %c0_6 = arith.constant 0 : index
    %4 = vector.load %arg0[%c0_5, %c0_6] : memref<128x128xbf16, #tpu.memory_space<vmem>>, vector<128x128xbf16>
    %c0_7 = arith.constant 0 : index
    %c0_8 = arith.constant 0 : index
    %5 = vector.load %arg4[%c0_7, %c0_8] : memref<128x128xbf16, #tpu.memory_space<vmem>>, vector<128x128xbf16>
    %c0_9 = arith.constant 0 : index
    %c0_10 = arith.constant 0 : index
    %6 = vector.load %arg5[%c0_9, %c0_10] : memref<1x128xf32, #tpu.memory_space<vmem>>, vector<1x128xf32>
    %cst = arith.constant dense<0.000000e+00> : vector<128x128xf32>
    %7 = tpu.matmul %4, %5, %cst {dimension_numbers = #tpu.dot_dimension_numbers<[1], [0], [0], [1], [0, 0, 1, 1], [], []>} : vector<128x128xbf16>, vector<128x128xbf16>, vector<128x128xf32> -> vector<128x128xf32>
    %8 = arith.truncf %7 : vector<128x128xf32> to vector<128x128xbf16>
    %cst_11 = arith.constant dense<0.000000e+00> : vector<128x128xf32>
    %9 = tpu.matmul %1, %8, %cst_11 {dimension_numbers = #tpu.dot_dimension_numbers<[1], [0], [0], [1], [0, 0, 1, 1], [], []>} : vector<128x128xbf16>, vector<128x128xbf16>, vector<128x128xf32> -> vector<128x128xf32>
    %10 = vector.broadcast %3 : vector<128x1xf32> to vector<128x128xf32>
    %11 = arith.mulf %9, %10 : vector<128x128xf32>
    %12 = arith.truncf %11 : vector<128x128xf32> to vector<128x128xbf16>
    %cst_12 = arith.constant dense<0.000000e+00> : vector<128x128xf32>
    %13 = tpu.matmul %0, %12, %cst_12 {dimension_numbers = #tpu.dot_dimension_numbers<[1], [0], [0], [1], [0, 0, 1, 1], [], []>} : vector<128x128xbf16>, vector<128x128xbf16>, vector<128x128xf32> -> vector<128x128xf32>
    %14 = vector.broadcast %2 : vector<128x1xf32> to vector<128x128xf32>
    %15 = arith.mulf %13, %14 : vector<128x128xf32>
    %16 = vector.broadcast %6 : vector<1x128xf32> to vector<128x128xf32>
    %17 = arith.addf %15, %16 : vector<128x128xf32>
    %cst_13 = arith.constant 0.000000e+00 : f32
    %18 = vector.broadcast %cst_13 : f32 to vector<128x128xf32>
    %19 = arith.maximumf %17, %18 : vector<128x128xf32>
    %20 = arith.truncf %19 : vector<128x128xf32> to vector<128x128xbf16>
    %c0_14 = arith.constant 0 : index
    %c0_15 = arith.constant 0 : index
    %21 = vector.load %arg6[%c0_14, %c0_15] : memref<128x128xbf16, #tpu.memory_space<vmem>>, vector<128x128xbf16>
    %c0_16 = arith.constant 0 : index
    %c0_17 = arith.constant 0 : index
    %22 = vector.load %arg7[%c0_16, %c0_17] : memref<1x128xf32, #tpu.memory_space<vmem>>, vector<1x128xf32>
    %cst_18 = arith.constant dense<0.000000e+00> : vector<128x128xf32>
    %23 = tpu.matmul %20, %21, %cst_18 {dimension_numbers = #tpu.dot_dimension_numbers<[1], [0], [0], [1], [0, 0, 1, 1], [], []>} : vector<128x128xbf16>, vector<128x128xbf16>, vector<128x128xf32> -> vector<128x128xf32>
    %24 = arith.truncf %23 : vector<128x128xf32> to vector<128x128xbf16>
    %cst_19 = arith.constant dense<0.000000e+00> : vector<128x128xf32>
    %25 = tpu.matmul %1, %24, %cst_19 {dimension_numbers = #tpu.dot_dimension_numbers<[1], [0], [0], [1], [0, 0, 1, 1], [], []>} : vector<128x128xbf16>, vector<128x128xbf16>, vector<128x128xf32> -> vector<128x128xf32>
    %26 = vector.broadcast %3 : vector<128x1xf32> to vector<128x128xf32>
    %27 = arith.mulf %25, %26 : vector<128x128xf32>
    %28 = arith.truncf %27 : vector<128x128xf32> to vector<128x128xbf16>
    %cst_20 = arith.constant dense<0.000000e+00> : vector<128x128xf32>
    %29 = tpu.matmul %0, %28, %cst_20 {dimension_numbers = #tpu.dot_dimension_numbers<[1], [0], [0], [1], [0, 0, 1, 1], [], []>} : vector<128x128xbf16>, vector<128x128xbf16>, vector<128x128xf32> -> vector<128x128xf32>
    %30 = vector.broadcast %2 : vector<128x1xf32> to vector<128x128xf32>
    %31 = arith.mulf %29, %30 : vector<128x128xf32>
    %32 = vector.broadcast %22 : vector<1x128xf32> to vector<128x128xf32>
    %33 = arith.addf %31, %32 : vector<128x128xf32>
    %cst_21 = arith.constant 0.000000e+00 : f32
    %34 = vector.broadcast %cst_21 : f32 to vector<128x128xf32>
    %35 = arith.maximumf %33, %34 : vector<128x128xf32>
    %36 = arith.truncf %35 : vector<128x128xf32> to vector<128x128xbf16>
    %c0_22 = arith.constant 0 : index
    %c0_23 = arith.constant 0 : index
    %37 = vector.load %arg8[%c0_22, %c0_23] : memref<128x128xbf16, #tpu.memory_space<vmem>>, vector<128x128xbf16>
    %c0_24 = arith.constant 0 : index
    %c0_25 = arith.constant 0 : index
    %38 = vector.load %arg9[%c0_24, %c0_25] : memref<1x128xf32, #tpu.memory_space<vmem>>, vector<1x128xf32>
    %cst_26 = arith.constant dense<0.000000e+00> : vector<128x128xf32>
    %39 = tpu.matmul %36, %37, %cst_26 {dimension_numbers = #tpu.dot_dimension_numbers<[1], [0], [0], [1], [0, 0, 1, 1], [], []>} : vector<128x128xbf16>, vector<128x128xbf16>, vector<128x128xf32> -> vector<128x128xf32>
    %40 = arith.truncf %39 : vector<128x128xf32> to vector<128x128xbf16>
    %cst_27 = arith.constant dense<0.000000e+00> : vector<128x128xf32>
    %41 = tpu.matmul %1, %40, %cst_27 {dimension_numbers = #tpu.dot_dimension_numbers<[1], [0], [0], [1], [0, 0, 1, 1], [], []>} : vector<128x128xbf16>, vector<128x128xbf16>, vector<128x128xf32> -> vector<128x128xf32>
    %42 = vector.broadcast %3 : vector<128x1xf32> to vector<128x128xf32>
    %43 = arith.mulf %41, %42 : vector<128x128xf32>
    %44 = arith.truncf %43 : vector<128x128xf32> to vector<128x128xbf16>
    %cst_28 = arith.constant dense<0.000000e+00> : vector<128x128xf32>
    %45 = tpu.matmul %0, %44, %cst_28 {dimension_numbers = #tpu.dot_dimension_numbers<[1], [0], [0], [1], [0, 0, 1, 1], [], []>} : vector<128x128xbf16>, vector<128x128xbf16>, vector<128x128xf32> -> vector<128x128xf32>
    %46 = vector.broadcast %2 : vector<128x1xf32> to vector<128x128xf32>
    %47 = arith.mulf %45, %46 : vector<128x128xf32>
    %48 = vector.broadcast %38 : vector<1x128xf32> to vector<128x128xf32>
    %49 = arith.addf %47, %48 : vector<128x128xf32>
    %c0_29 = arith.constant 0 : index
    %c0_30 = arith.constant 0 : index
    %50 = vector.load %arg10[%c0_29, %c0_30] : memref<128x128xf32, #tpu.memory_space<vmem>>, vector<128x128xf32>
    tpu.vector_store %arg10[%c0_29, %c0_30], %49 {strides = array<i32>} : memref<128x128xf32, #tpu.memory_space<vmem>>, vector<128x128xf32>,
    return
  }
}

</mosaic_0001>

<llo_original>
// kernel: tpu_custom_call.1
$region0: #{tpu_custom_call.1}
  #allocation0 [shape = 'u32[]', space=smem, size = 0x4, offset = 0x4, fixed_abs, tag = 'smem constant byte address 0x4 - core index']
  #allocation1 [shape = 'u32[144,128]{1,0:T(1,128)}', space=vmem, size = 0x12000, scoped, tag = 'internal scratch']
  %s0 = inlined_call_operand.vmem [shape: bf16[128,128], index: 0, kind: input, shape index: {}]
  %s1 = inlined_call_operand.vmem [shape: bf16[128,128], index: 1, kind: input, shape index: {}]
  %s2 = inlined_call_operand.vmem [shape: f32[128,1], index: 2, kind: input, shape index: {}]
  %s3 = inlined_call_operand.vmem [shape: f32[128,1], index: 3, kind: input, shape index: {}]
  %s4 = inlined_call_operand.vmem [shape: bf16[128,128], index: 4, kind: input, shape index: {}]
  %s5 = inlined_call_operand.vmem [shape: f32[1,128], index: 5, kind: input, shape index: {}]
  %s6 = inlined_call_operand.vmem [shape: bf16[128,128], index: 6, kind: input, shape index: {}]
  %s7 = inlined_call_operand.vmem [shape: f32[1,128], index: 7, kind: input, shape index: {}]
  %s8 = inlined_call_operand.hbm [shape: bf16[128,128], index: 8, kind: input, shape index: {}]
  %s9 = inlined_call_operand.vmem [shape: f32[1,128], index: 9, kind: input, shape index: {}]
  %s10 = inlined_call_operand.hbm [shape: f32[128,128], index: 10, kind: output, shape index: {}]
  %s11 = sld [smem:[#allocation0]]
  $region54: #{tpu_custom_call.1} parent=0
    _
  %s13 = ssub.s32 1, %s11
  %s14 = scalar_select 0, %s13, %s11
  $region1: #{tpu_custom_call.1} parent=0
    #allocation2 [shape = 'u8[32768]{0}', space=vmem, size = 0x8000, scoped, tag = 'input window, operand 8, single buffered']
    #allocation3 [shape = 's32[1]{0}', space=sflag, size = 0x4, scoped, tag = 'scoped memory for tpu_custom_call.1']
    #allocation4 [shape = 's32[1]{0}', space=sflag, size = 0x4, scoped, tag = 'scoped memory for tpu_custom_call.1']
    #allocation5 [shape = 'u8[65536]{0}', space=vmem, size = 0x10000, scoped, tag = 'output window, operand 0, single buffered']
    %15 = vsyncpa [#allocation3], 0
    %16 = vsyncpa [#allocation4], 0
    // Predicated region
    $region2: #{tpu_custom_call.1} parent=1 // pred_check
      _
    $region3: #{tpu_custom_call.1} parent=1 // pred_check_branch
      %18 = sbr.rel (0) target = $region5
    $region4: #{tpu_custom_call.1} parent=1 // pred_region
      _
    $region5: #{tpu_custom_call.1} parent=1 // pred_fallthru
      _
    // Predicated region
    $region6: #{tpu_custom_call.1} parent=1 // pred_check
      _
    $region7: #{tpu_custom_call.1} parent=1 // pred_check_branch
      %20 = sbr.rel (0) target = $region9
    $region8: #{tpu_custom_call.1} parent=1 // pred_region
      _
    $region9: #{tpu_custom_call.1} parent=1 // pred_fallthru
      _
    // Predicated region
    $region10: #{tpu_custom_call.1} parent=1 // pred_check
      _
    $region11: #{tpu_custom_call.1} parent=1 // pred_check_branch
      %22 = sbr.rel (0) target = $region13
    $region12: #{tpu_custom_call.1} parent=1 // pred_region
      _
    $region13: #{tpu_custom_call.1} parent=1 // pred_fallthru
      _
    // Predicated region
    $region14: #{tpu_custom_call.1} parent=1 // pred_check
      _
    $region15: #{tpu_custom_call.1} parent=1 // pred_check_branch
      %24 = sbr.rel (0) target = $region17
    $region16: #{tpu_custom_call.1} parent=1 // pred_region
      _
    $region17: #{tpu_custom_call.1} parent=1 // pred_fallthru
      _
    // Predicated region
    $region18: #{tpu_custom_call.1} parent=1 // pred_check
      _
    $region19: #{tpu_custom_call.1} parent=1 // pred_check_branch
      %26 = sbr.rel (0) target = $region21
    $region20: #{tpu_custom_call.1} parent=1 // pred_region
      _
    $region21: #{tpu_custom_call.1} parent=1 // pred_fallthru
      _
    // Predicated region
    $region22: #{tpu_custom_call.1} parent=1 // pred_check
      _
    $region23: #{tpu_custom_call.1} parent=1 // pred_check_branch
      %28 = sbr.rel (0) target = $region25
    $region24: #{tpu_custom_call.1} parent=1 // pred_region
      _
    $region25: #{tpu_custom_call.1} parent=1 // pred_fallthru
      _
    // Predicated region
    $region26: #{tpu_custom_call.1} parent=1 // pred_check
      _
    $region27: #{tpu_custom_call.1} parent=1 // pred_check_branch
      %30 = sbr.rel (0) target = $region29
    $region28: #{tpu_custom_call.1} parent=1 // pred_region
      _
    $region29: #{tpu_custom_call.1} parent=1 // pred_fallthru
      _
    // Predicated region
    $region30: #{tpu_custom_call.1} parent=1 // pred_check
      _
    $region31: #{tpu_custom_call.1} parent=1 // pred_check_branch
      %32 = sbr.rel (0) target = $region33
    $region32: #{tpu_custom_call.1} parent=1 // pred_region
      _
    $region33: #{tpu_custom_call.1} parent=1 // pred_fallthru
      _
    // Predicated region
    $region34: #{tpu_custom_call.1} parent=1 // pred_check
      _
    $region35: #{tpu_custom_call.1} parent=1 // pred_check_branch
      %34 = sbr.rel (0) target = $region37
    $region36: #{tpu_custom_call.1} parent=1 // pred_region
      %s36 = ssub.s32 1024, 1024
      %37 = vsyncadd [#allocation3], %s36
      %s38 = sshll.u32 [#allocation2], 4
      %s39 = int_to_ptr.vmem [resolvable:$true] %s38
      %44 = dma.hbm_to_vmem [thread:$0]  %s8, 1024, %s39, [#allocation3], 64, 64, 4
    $region37: #{tpu_custom_call.1} parent=1 // pred_fallthru
      _
    // Predicated region
    $region38: #{tpu_custom_call.1} parent=1 // pred_check
      _
    $region39: #{tpu_custom_call.1} parent=1 // pred_check_branch
      %46 = sbr.rel (0) target = $region41
    $region40: #{tpu_custom_call.1} parent=1 // pred_region
      _
    $region41: #{tpu_custom_call.1} parent=1 // pred_fallthru
      _
    // Predicated region
    $region42: #{tpu_custom_call.1} parent=1 // pred_check
      _
    $region43: #{tpu_custom_call.1} parent=1 // pred_check_branch
      %48 = sbr.rel (0) target = $region45
    $region44: #{tpu_custom_call.1} parent=1 // pred_region
      %49 = dma.done [#allocation3], 1024
    $region45: #{tpu_custom_call.1} parent=1 // pred_fallthru
      _
    %v51 = vld [vmem:[%s1] sm:$0xf]
    %v52 = vld [vmem:[%s1 + $0x4] sm:$0xf]
    %v53 = vld [vmem:[%s1 + $0x8] sm:$0xf]
    %v54 = vld [vmem:[%s1 + $0xc] sm:$0xf]
    %v55 = vld [vmem:[%s1 + $0x10] sm:$0xf]
    %v56 = vld [vmem:[%s1 + $0x14] sm:$0xf]
    %v57 = vld [vmem:[%s1 + $0x18] sm:$0xf]
    %v58 = vld [vmem:[%s1 + $0x1c] sm:$0xf]
    %v59 = vld [vmem:[%s1 + $0x20] sm:$0xf]
    %v60 = vld [vmem:[%s1 + $0x24] sm:$0xf]
    %v61 = vld [vmem:[%s1 + $0x28] sm:$0xf]
    %v62 = vld [vmem:[%s1 + $0x2c] sm:$0xf]
    %v63 = vld [vmem:[%s1 + $0x30] sm:$0xf]
    %v64 = vld [vmem:[%s1 + $0x34] sm:$0xf]
    %v65 = vld [vmem:[%s1 + $0x38] sm:$0xf]
    %v66 = vld [vmem:[%s1 + $0x3c] sm:$0xf]
    %v83 = vunpack.c.l.b16 %v51
    %v84 = vunpack.c.l.b16 %v52
    %v85 = vunpack.c.l.b16 %v53
    %v86 = vunpack.c.l.b16 %v54
    %v87 = vunpack.c.l.b16 %v55
    %v88 = vunpack.c.l.b16 %v56
    %v89 = vunpack.c.l.b16 %v57
    %v90 = vunpack.c.l.b16 %v58
    %v91 = vunpack.c.l.b16 %v59
    %v92 = vunpack.c.l.b16 %v60
    %v93 = vunpack.c.l.b16 %v61
    %v94 = vunpack.c.l.b16 %v62
    %v95 = vunpack.c.l.b16 %v63
    %v96 = vunpack.c.l.b16 %v64
    %v97 = vunpack.c.l.b16 %v65
    %v98 = vunpack.c.l.b16 %v66
    %v99 = vpack.c.b16 %v84, %v83
    %v100 = vpack.c.b16 %v86, %v85
    %v101 = vpack.c.b16 %v88, %v87
    %v102 = vpack.c.b16 %v90, %v89
    %v103 = vpack.c.b16 %v92, %v91
    %v104 = vpack.c.b16 %v94, %v93
    %v105 = vpack.c.b16 %v96, %v95
    %v106 = vpack.c.b16 %v98, %v97
    %115 = vxpose.xlu0.c.b16.start [1/8] %v99, 128
    %116 = vxpose.xlu0.c.b16.cont [2/8] %v100, 128
    %117 = vxpose.xlu0.c.b16.cont [3/8] %v101, 128
    %118 = vxpose.xlu0.c.b16.cont [4/8] %v102, 128
    %119 = vxpose.xlu0.c.b16.cont [5/8] %v103, 128
    %120 = vxpose.xlu0.c.b16.cont [6/8] %v104, 128
    %121 = vxpose.xlu0.c.b16.cont [7/8] %v105, 128
    %122 = vxpose.xlu0.c.b16.end [8/8] %v106, 128
    %v123 = vpop.trf.xlu0
    %v124 = vpop.trf.xlu0
    %v125 = vpop.trf.xlu0
    %v126 = vpop.trf.xlu0
    %v127 = vpop.trf.xlu0
    %v128 = vpop.trf.xlu0
    %v129 = vpop.trf.xlu0
    %v130 = vpop.trf.xlu0
    %v131 = vld [vmem:[%s2] sm:$0xff]
    %v132 = vld [vmem:[%s2 + $0x8] sm:$0xff]
    %v133 = vld [vmem:[%s2 + $0x10] sm:$0xff]
    %v134 = vld [vmem:[%s2 + $0x18] sm:$0xff]
    %v135 = vld [vmem:[%s2 + $0x20] sm:$0xff]
    %v136 = vld [vmem:[%s2 + $0x28] sm:$0xff]
    %v137 = vld [vmem:[%s2 + $0x30] sm:$0xff]
    %v138 = vld [vmem:[%s2 + $0x38] sm:$0xff]
    %v139 = vld [vmem:[%s2 + $0x40] sm:$0xff]
    %v140 = vld [vmem:[%s2 + $0x48] sm:$0xff]
    %v141 = vld [vmem:[%s2 + $0x50] sm:$0xff]
    %v142 = vld [vmem:[%s2 + $0x58] sm:$0xff]
    %v143 = vld [vmem:[%s2 + $0x60] sm:$0xff]
    %v144 = vld [vmem:[%s2 + $0x68] sm:$0xff]
    %v145 = vld [vmem:[%s2 + $0x70] sm:$0xff]
    %v146 = vld [vmem:[%s2 + $0x78] sm:$0xff]
    %v147 = vld [vmem:[%s3] sm:$0xff]
    %v148 = vld [vmem:[%s3 + $0x8] sm:$0xff]
    %v149 = vld [vmem:[%s3 + $0x10] sm:$0xff]
    %v150 = vld [vmem:[%s3 + $0x18] sm:$0xff]
    %v151 = vld [vmem:[%s3 + $0x20] sm:$0xff]
    %v152 = vld [vmem:[%s3 + $0x28] sm:$0xff]
    %v153 = vld [vmem:[%s3 + $0x30] sm:$0xff]
    %v154 = vld [vmem:[%s3 + $0x38] sm:$0xff]
    %v155 = vld [vmem:[%s3 + $0x40] sm:$0xff]
    %v156 = vld [vmem:[%s3 + $0x48] sm:$0xff]
    %v157 = vld [vmem:[%s3 + $0x50] sm:$0xff]
    %v158 = vld [vmem:[%s3 + $0x58] sm:$0xff]
    %v159 = vld [vmem:[%s3 + $0x60] sm:$0xff]
    %v160 = vld [vmem:[%s3 + $0x68] sm:$0xff]
    %v161 = vld [vmem:[%s3 + $0x70] sm:$0xff]
    %v162 = vld [vmem:[%s3 + $0x78] sm:$0xff]
    %v163 = vld [vmem:[%s0] sm:$0xf]
    %v164 = vld [vmem:[%s0 + $0x4] sm:$0xf]
    %v165 = vld [vmem:[%s0 + $0x8] sm:$0xf]
    %v166 = vld [vmem:[%s0 + $0xc] sm:$0xf]
    %v167 = vld [vmem:[%s0 + $0x10] sm:$0xf]
    %v168 = vld [vmem:[%s0 + $0x14] sm:$0xf]
    %v169 = vld [vmem:[%s0 + $0x18] sm:$0xf]
    %v170 = vld [vmem:[%s0 + $0x1c] sm:$0xf]
    %v171 = vld [vmem:[%s0 + $0x20] sm:$0xf]
    %v172 = vld [vmem:[%s0 + $0x24] sm:$0xf]
    %v173 = vld [vmem:[%s0 + $0x28] sm:$0xf]
    %v174 = vld [vmem:[%s0 + $0x2c] sm:$0xf]
    %v175 = vld [vmem:[%s0 + $0x30] sm:$0xf]
    %v176 = vld [vmem:[%s0 + $0x34] sm:$0xf]
    %v177 = vld [vmem:[%s0 + $0x38] sm:$0xf]
    %v178 = vld [vmem:[%s0 + $0x3c] sm:$0xf]
    %v179 = vld [vmem:[%s4] sm:$0xf]
    %v180 = vld [vmem:[%s4 + $0x4] sm:$0xf]
    %v181 = vld [vmem:[%s4 + $0x8] sm:$0xf]
    %v182 = vld [vmem:[%s4 + $0xc] sm:$0xf]
    %v183 = vld [vmem:[%s4 + $0x10] sm:$0xf]
    %v184 = vld [vmem:[%s4 + $0x14] sm:$0xf]
    %v185 = vld [vmem:[%s4 + $0x18] sm:$0xf]
    %v186 = vld [vmem:[%s4 + $0x1c] sm:$0xf]
    %v187 = vld [vmem:[%s4 + $0x20] sm:$0xf]
    %v188 = vld [vmem:[%s4 + $0x24] sm:$0xf]
    %v189 = vld [vmem:[%s4 + $0x28] sm:$0xf]
    %v190 = vld [vmem:[%s4 + $0x2c] sm:$0xf]
    %v191 = vld [vmem:[%s4 + $0x30] sm:$0xf]
    %v192 = vld [vmem:[%s4 + $0x34] sm:$0xf]
    %v193 = vld [vmem:[%s4 + $0x38] sm:$0xf]
    %v194 = vld [vmem:[%s4 + $0x3c] sm:$0xf]
    %v195 = vld [vmem:[%s5] sm:$0x1]
    %v212 = vunpack.c.l.b16 %v163
    %v213 = vunpack.c.l.b16 %v164
    %v214 = vunpack.c.l.b16 %v165
    %v215 = vunpack.c.l.b16 %v166
    %v216 = vunpack.c.l.b16 %v167
    %v217 = vunpack.c.l.b16 %v168
    %v218 = vunpack.c.l.b16 %v169
    %v219 = vunpack.c.l.b16 %v170
    %v220 = vunpack.c.l.b16 %v171
    %v221 = vunpack.c.l.b16 %v172
    %v222 = vunpack.c.l.b16 %v173
    %v223 = vunpack.c.l.b16 %v174
    %v224 = vunpack.c.l.b16 %v175
    %v225 = vunpack.c.l.b16 %v176
    %v226 = vunpack.c.l.b16 %v177
    %v227 = vunpack.c.l.b16 %v178
    %v228 = vpack.c.b16 %v213, %v212
    %v229 = vpack.c.b16 %v215, %v214
    %v230 = vpack.c.b16 %v217, %v216
    %v231 = vpack.c.b16 %v219, %v218
    %v232 = vpack.c.b16 %v221, %v220
    %v233 = vpack.c.b16 %v223, %v222
    %v234 = vpack.c.b16 %v225, %v224
    %v235 = vpack.c.b16 %v227, %v226
    %v260 = vunpack.c.l.b16 %v179
    %v261 = vunpack.c.l.b16 %v180
    %v262 = vunpack.c.l.b16 %v181
    %v263 = vunpack.c.l.b16 %v182
    %v264 = vunpack.c.l.b16 %v183
    %v265 = vunpack.c.l.b16 %v184
    %v266 = vunpack.c.l.b16 %v185
    %v267 = vunpack.c.l.b16 %v186
    %v268 = vunpack.c.l.b16 %v187
    %v269 = vunpack.c.l.b16 %v188
    %v270 = vunpack.c.l.b16 %v189
    %v271 = vunpack.c.l.b16 %v190
    %v272 = vunpack.c.l.b16 %v191
    %v273 = vunpack.c.l.b16 %v192
    %v274 = vunpack.c.l.b16 %v193
    %v275 = vunpack.c.l.b16 %v194
    %v276 = vpack.c.b16 %v261, %v260
    %v277 = vpack.c.b16 %v263, %v262
    %v278 = vpack.c.b16 %v265, %v264
    %v279 = vpack.c.b16 %v267, %v266
    %v280 = vpack.c.b16 %v269, %v268
    %v281 = vpack.c.b16 %v271, %v270
    %v282 = vpack.c.b16 %v273, %v272
    %v283 = vpack.c.b16 %v275, %v274
    %292 = vmatprep.subr.bf16.mxu0 0
    %293 = vmatpush1.bf16.msra.mxu0 %v283
    %294 = vmatprep.subr.bf16.mxu0 0
    %295 = vmatpush1.bf16.msra.mxu0 %v282
    %296 = vmatprep.subr.bf16.mxu0 0
    %297 = vmatpush1.bf16.msra.mxu0 %v281
    %298 = vmatprep.subr.bf16.mxu0 0
    %299 = vmatpush1.bf16.msra.mxu0 %v280
    %300 = vmatprep.subr.bf16.mxu0 0
    %301 = vmatpush1.bf16.msra.mxu0 %v279
    %302 = vmatprep.subr.bf16.mxu0 0
    %303 = vmatpush1.bf16.msra.mxu0 %v278
    %304 = vmatprep.subr.bf16.mxu0 0
    %305 = vmatpush1.bf16.msra.mxu0 %v277
    %306 = vmatprep.subr.bf16.mxu0 0
    %307 = vmatpush1.bf16.msra.mxu0 %v276
    %308 = vmatprep.subr.bf16.mxu0 0
    %309 = vmatpush2.bf16.msra.mxu0 0
    %310 = vmatprep.subr.bf16.mxu0 0
    %311 = vmatpush2.bf16.msra.mxu0 0
    %312 = vmatprep.subr.bf16.mxu0 0
    %313 = vmatpush2.bf16.msra.mxu0 0
    %314 = vmatprep.subr.bf16.mxu0 0
    %315 = vmatpush2.bf16.msra.mxu0 0
    %316 = vmatprep.subr.bf16.mxu0 0
    %317 = vmatpush2.bf16.msra.mxu0 0
    %318 = vmatprep.subr.bf16.mxu0 0
    %319 = vmatpush2.bf16.msra.mxu0 0
    %320 = vmatprep.subr.bf16.mxu0 0
    %321 = vmatpush2.bf16.msra.mxu0 0
    %322 = vmatprep.subr.bf16.mxu0 0
    %323 = vmatpush2.bf16.msra.mxu0 0
    %324 = vmatprep.mubr.bf16.mxu0 0
    %325 = vmatmul.mubr.bf16.gmra.mxu0 %v228
    %v326 = vpop.f32.mrf.mxu0
    %v327 = vadd.f32 0.0, %v326
    %v328 = vpop.f32.mrf.mxu0
    %v329 = vpop.f32.mrf.mxu0
    %v330 = vadd.f32 0.0, %v329
    %v331 = vpop.f32.mrf.mxu0
    %332 = vmatprep.mubr.bf16.mxu0 0
    %333 = vmatmul.mubr.bf16.gmra.mxu0 %v229
    %v334 = vpop.f32.mrf.mxu0
    %v335 = vadd.f32 0.0, %v334
    %v336 = vpop.f32.mrf.mxu0
    %v337 = vpop.f32.mrf.mxu0
    %v338 = vadd.f32 0.0, %v337
    %v339 = vpop.f32.mrf.mxu0
    %340 = vmatprep.mubr.bf16.mxu0 0
    %341 = vmatmul.mubr.bf16.gmra.mxu0 %v230
    %v342 = vpop.f32.mrf.mxu0
    %v343 = vadd.f32 0.0, %v342
    %v344 = vpop.f32.mrf.mxu0
    %v345 = vpop.f32.mrf.mxu0
    %v346 = vadd.f32 0.0, %v345
    %v347 = vpop.f32.mrf.mxu0
    %348 = vmatprep.mubr.bf16.mxu0 0
    %349 = vmatmul.mubr.bf16.gmra.mxu0 %v231
    %v350 = vpop.f32.mrf.mxu0
    %v351 = vadd.f32 0.0, %v350
    %v352 = vpop.f32.mrf.mxu0
    %v353 = vpop.f32.mrf.mxu0
    %v354 = vadd.f32 0.0, %v353
    %v355 = vpop.f32.mrf.mxu0
    %356 = vmatprep.mubr.bf16.mxu0 0
    %357 = vmatmul.mubr.bf16.gmra.mxu0 %v232
    %v358 = vpop.f32.mrf.mxu0
    %v359 = vadd.f32 0.0, %v358
    %v360 = vpop.f32.mrf.mxu0
    %v361 = vpop.f32.mrf.mxu0
    %v362 = vadd.f32 0.0, %v361
    %v363 = vpop.f32.mrf.mxu0
    %364 = vmatprep.mubr.bf16.mxu0 0
    %365 = vmatmul.mubr.bf16.gmra.mxu0 %v233
    %v366 = vpop.f32.mrf.mxu0
    %v367 = vadd.f32 0.0, %v366
    %v368 = vpop.f32.mrf.mxu0
    %v369 = vpop.f32.mrf.mxu0
    %v370 = vadd.f32 0.0, %v369
    %v371 = vpop.f32.mrf.mxu0
    %372 = vmatprep.mubr.bf16.mxu0 0
    %373 = vmatmul.mubr.bf16.gmra.mxu0 %v234
    %v374 = vpop.f32.mrf.mxu0
    %v375 = vadd.f32 0.0, %v374
    %v376 = vpop.f32.mrf.mxu0
    %v377 = vpop.f32.mrf.mxu0
    %v378 = vadd.f32 0.0, %v377
    %v379 = vpop.f32.mrf.mxu0
    %380 = vmatprep.mubr.bf16.mxu0 0
    %381 = vmatmul.mubr.bf16.gmra.mxu0 %v235
    %v382 = vpop.f32.mrf.mxu0
    %v383 = vadd.f32 0.0, %v382
    %v384 = vpop.f32.mrf.mxu0
    %v385 = vpop.f32.mrf.mxu0
    %v386 = vadd.f32 0.0, %v385
    %v387 = vpop.f32.mrf.mxu0
    %388 = vdwg.mxu0
    %v389 = vpack.c.bf16 %v330, %v327
    %v390 = vpack.c.bf16 %v338, %v335
    %v391 = vpack.c.bf16 %v346, %v343
    %v392 = vpack.c.bf16 %v354, %v351
    %v393 = vpack.c.bf16 %v362, %v359
    %v394 = vpack.c.bf16 %v370, %v367
    %v395 = vpack.c.bf16 %v378, %v375
    %v396 = vpack.c.bf16 %v386, %v383
    %397 = vmatprep.subr.bf16.mxu0 0
    %398 = vmatpush1.bf16.msra.mxu0 %v396
    %399 = vmatprep.subr.bf16.mxu0 0
    %400 = vmatpush1.bf16.msra.mxu0 %v395
    %401 = vmatprep.subr.bf16.mxu0 0
    %402 = vmatpush1.bf16.msra.mxu0 %v394
    %403 = vmatprep.subr.bf16.mxu0 0
    %404 = vmatpush1.bf16.msra.mxu0 %v393
    %405 = vmatprep.subr.bf16.mxu0 0
    %406 = vmatpush1.bf16.msra.mxu0 %v392
    %407 = vmatprep.subr.bf16.mxu0 0
    %408 = vmatpush1.bf16.msra.mxu0 %v391
    %409 = vmatprep.subr.bf16.mxu0 0
    %410 = vmatpush1.bf16.msra.mxu0 %v390
    %411 = vmatprep.subr.bf16.mxu0 0
    %412 = vmatpush1.bf16.msra.mxu0 %v389
    %413 = vmatprep.subr.bf16.mxu0 0
    %414 = vmatpush2.bf16.msra.mxu0 0
    %415 = vmatprep.subr.bf16.mxu0 0
    %416 = vmatpush2.bf16.msra.mxu0 0
    %417 = vmatprep.subr.bf16.mxu0 0
    %418 = vmatpush2.bf16.msra.mxu0 0
    %419 = vmatprep.subr.bf16.mxu0 0
    %420 = vmatpush2.bf16.msra.mxu0 0
    %421 = vmatprep.subr.bf16.mxu0 0
    %422 = vmatpush2.bf16.msra.mxu0 0
    %423 = vmatprep.subr.bf16.mxu0 0
    %424 = vmatpush2.bf16.msra.mxu0 0
    %425 = vmatprep.subr.bf16.mxu0 0
    %426 = vmatpush2.bf16.msra.mxu0 0
    %427 = vmatprep.subr.bf16.mxu0 0
    %428 = vmatpush2.bf16.msra.mxu0 0
    %429 = vmatprep.mubr.bf16.mxu0 0
    %430 = vmatmul.mubr.bf16.gmra.mxu0 %v123
    %v431 = vpop.f32.mrf.mxu0
    %v432 = vadd.f32 0.0, %v431
    %v433 = vpop.f32.mrf.mxu0
    %v434 = vpop.f32.mrf.mxu0
    %v435 = vadd.f32 0.0, %v434
    %v436 = vpop.f32.mrf.mxu0
    %437 = vmatprep.mubr.bf16.mxu0 0
    %438 = vmatmul.mubr.bf16.gmra.mxu0 %v124
    %v439 = vpop.f32.mrf.mxu0
    %v440 = vadd.f32 0.0, %v439
    %v441 = vpop.f32.mrf.mxu0
    %v442 = vpop.f32.mrf.mxu0
    %v443 = vadd.f32 0.0, %v442
    %v444 = vpop.f32.mrf.mxu0
    %445 = vmatprep.mubr.bf16.mxu0 0
    %446 = vmatmul.mubr.bf16.gmra.mxu0 %v125
    %v447 = vpop.f32.mrf.mxu0
    %v448 = vadd.f32 0.0, %v447
    %v449 = vpop.f32.mrf.mxu0
    %v450 = vpop.f32.mrf.mxu0
    %v451 = vadd.f32 0.0, %v450
    %v452 = vpop.f32.mrf.mxu0
    %453 = vmatprep.mubr.bf16.mxu0 0
    %454 = vmatmul.mubr.bf16.gmra.mxu0 %v126
    %v455 = vpop.f32.mrf.mxu0
    %v456 = vadd.f32 0.0, %v455
    %v457 = vpop.f32.mrf.mxu0
    %v458 = vpop.f32.mrf.mxu0
    %v459 = vadd.f32 0.0, %v458
    %v460 = vpop.f32.mrf.mxu0
    %461 = vmatprep.mubr.bf16.mxu0 0
    %462 = vmatmul.mubr.bf16.gmra.mxu0 %v127
    %v463 = vpop.f32.mrf.mxu0
    %v464 = vadd.f32 0.0, %v463
    %v465 = vpop.f32.mrf.mxu0
    %v466 = vpop.f32.mrf.mxu0
    %v467 = vadd.f32 0.0, %v466
    %v468 = vpop.f32.mrf.mxu0
    %469 = vmatprep.mubr.bf16.mxu0 0
    %470 = vmatmul.mubr.bf16.gmra.mxu0 %v128
    %v471 = vpop.f32.mrf.mxu0
    %v472 = vadd.f32 0.0, %v471
    %v473 = vpop.f32.mrf.mxu0
    %v474 = vpop.f32.mrf.mxu0
    %v475 = vadd.f32 0.0, %v474
    %v476 = vpop.f32.mrf.mxu0
    %477 = vmatprep.mubr.bf16.mxu0 0
    %478 = vmatmul.mubr.bf16.gmra.mxu0 %v129
    %v479 = vpop.f32.mrf.mxu0
    %v480 = vadd.f32 0.0, %v479
    %v481 = vpop.f32.mrf.mxu0
    %v482 = vpop.f32.mrf.mxu0
    %v483 = vadd.f32 0.0, %v482
    %v484 = vpop.f32.mrf.mxu0
    %485 = vmatprep.mubr.bf16.mxu0 0
    %486 = vmatmul.mubr.bf16.gmra.mxu0 %v130
    %v487 = vpop.f32.mrf.mxu0
    %v488 = vadd.f32 0.0, %v487
    %v489 = vpop.f32.mrf.mxu0
    %v490 = vpop.f32.mrf.mxu0
    %v491 = vadd.f32 0.0, %v490
    %v492 = vpop.f32.mrf.mxu0
    %493 = vdwg.mxu0
    %495 = vset.pattern.permute.xlu0 0
    %496 = vperm.xlu0 %495, %v147
    %v497 = vpop.permute.xlu0 %496
    %500 = vset.pattern.permute.xlu0 0
    %501 = vperm.xlu0 %500, %v148
    %v502 = vpop.permute.xlu0 %501
    %505 = vset.pattern.permute.xlu0 0
    %506 = vperm.xlu0 %505, %v149
    %v507 = vpop.permute.xlu0 %506
    %510 = vset.pattern.permute.xlu0 0
    %511 = vperm.xlu0 %510, %v150
    %v512 = vpop.permute.xlu0 %511
    %515 = vset.pattern.permute.xlu0 0
    %516 = vperm.xlu0 %515, %v151
    %v517 = vpop.permute.xlu0 %516
    %520 = vset.pattern.permute.xlu0 0
    %521 = vperm.xlu0 %520, %v152
    %v522 = vpop.permute.xlu0 %521
    %525 = vset.pattern.permute.xlu0 0
    %526 = vperm.xlu0 %525, %v153
    %v527 = vpop.permute.xlu0 %526
    %530 = vset.pattern.permute.xlu0 0
    %531 = vperm.xlu0 %530, %v154
    %v532 = vpop.permute.xlu0 %531
    %535 = vset.pattern.permute.xlu0 0
    %536 = vperm.xlu0 %535, %v155
    %v537 = vpop.permute.xlu0 %536
    %540 = vset.pattern.permute.xlu0 0
    %541 = vperm.xlu0 %540, %v156
    %v542 = vpop.permute.xlu0 %541
    %545 = vset.pattern.permute.xlu0 0
    %546 = vperm.xlu0 %545, %v157
    %v547 = vpop.permute.xlu0 %546
    %550 = vset.pattern.permute.xlu0 0
    %551 = vperm.xlu0 %550, %v158
    %v552 = vpop.permute.xlu0 %551
    %555 = vset.pattern.permute.xlu0 0
    %556 = vperm.xlu0 %555, %v159
    %v557 = vpop.permute.xlu0 %556
    %560 = vset.pattern.permute.xlu0 0
    %561 = vperm.xlu0 %560, %v160
    %v562 = vpop.permute.xlu0 %561
    %565 = vset.pattern.permute.xlu0 0
    %566 = vperm.xlu0 %565, %v161
    %v567 = vpop.permute.xlu0 %566
    %570 = vset.pattern.permute.xlu0 0
    %571 = vperm.xlu0 %570, %v162
    %v572 = vpop.permute.xlu0 %571
    %v574 = vmul.f32 %v432, %v497
    %v575 = vmul.f32 %v435, %v502
    %v576 = vmul.f32 %v440, %v507
    %v577 = vmul.f32 %v443, %v512
    %v578 = vmul.f32 %v448, %v517
    %v579 = vmul.f32 %v451, %v522
    %v580 = vmul.f32 %v456, %v527
    %v581 = vmul.f32 %v459, %v532
    %v582 = vmul.f32 %v464, %v537
    %v583 = vmul.f32 %v467, %v542
    %v584 = vmul.f32 %v472, %v547
    %v585 = vmul.f32 %v475, %v552
    %v586 = vmul.f32 %v480, %v557
    %v587 = vmul.f32 %v483, %v562
    %v588 = vmul.f32 %v488, %v567
    %v589 = vmul.f32 %v491, %v572
    %v590 = vpack.c.bf16 %v575, %v574
    %v591 = vpack.c.bf16 %v577, %v576
    %v592 = vpack.c.bf16 %v579, %v578
    %v593 = vpack.c.bf16 %v581, %v580
    %v594 = vpack.c.bf16 %v583, %v582
    %v595 = vpack.c.bf16 %v585, %v584
    %v596 = vpack.c.bf16 %v587, %v586
    %v597 = vpack.c.bf16 %v589, %v588
    %598 = vmatprep.subr.bf16.mxu0 0
    %599 = vmatpush1.bf16.msra.mxu0 %v597
    %600 = vmatprep.subr.bf16.mxu0 0
    %601 = vmatpush1.bf16.msra.mxu0 %v596
    %602 = vmatprep.subr.bf16.mxu0 0
    %603 = vmatpush1.bf16.msra.mxu0 %v595
    %604 = vmatprep.subr.bf16.mxu0 0
    %605 = vmatpush1.bf16.msra.mxu0 %v594
    %606 = vmatprep.subr.bf16.mxu0 0
    %607 = vmatpush1.bf16.msra.mxu0 %v593
    %608 = vmatprep.subr.bf16.mxu0 0
    %609 = vmatpush1.bf16.msra.mxu0 %v592
    %610 = vmatprep.subr.bf16.mxu0 0
    %611 = vmatpush1.bf16.msra.mxu0 %v591
    %612 = vmatprep.subr.bf16.mxu0 0
    %613 = vmatpush1.bf16.msra.mxu0 %v590
    %614 = vmatprep.subr.bf16.mxu0 0
    %615 = vmatpush2.bf16.msra.mxu0 0
    %616 = vmatprep.subr.bf16.mxu0 0
    %617 = vmatpush2.bf16.msra.mxu0 0
    %618 = vmatprep.subr.bf16.mxu0 0
    %619 = vmatpush2.bf16.msra.mxu0 0
    %620 = vmatprep.subr.bf16.mxu0 0
    %621 = vmatpush2.bf16.msra.mxu0 0
    %622 = vmatprep.subr.bf16.mxu0 0
    %623 = vmatpush2.bf16.msra.mxu0 0
    %624 = vmatprep.subr.bf16.mxu0 0
    %625 = vmatpush2.bf16.msra.mxu0 0
    %626 = vmatprep.subr.bf16.mxu0 0
    %627 = vmatpush2.bf16.msra.mxu0 0
    %628 = vmatprep.subr.bf16.mxu0 0
    %629 = vmatpush2.bf16.msra.mxu0 0
    %630 = vmatprep.mubr.bf16.mxu0 0
    %631 = vmatmul.mubr.bf16.gmra.mxu0 %v99
    %v632 = vpop.f32.mrf.mxu0
    %v633 = vadd.f32 0.0, %v632
    %v634 = vpop.f32.mrf.mxu0
    %v635 = vpop.f32.mrf.mxu0
    %v636 = vadd.f32 0.0, %v635
    %v637 = vpop.f32.mrf.mxu0
    %638 = vmatprep.mubr.bf16.mxu0 0
    %639 = vmatmul.mubr.bf16.gmra.mxu0 %v100
    %v640 = vpop.f32.mrf.mxu0
    %v641 = vadd.f32 0.0, %v640
    %v642 = vpop.f32.mrf.mxu0
    %v643 = vpop.f32.mrf.mxu0
    %v644 = vadd.f32 0.0, %v643
    %v645 = vpop.f32.mrf.mxu0
    %646 = vmatprep.mubr.bf16.mxu0 0
    %647 = vmatmul.mubr.bf16.gmra.mxu0 %v101
    %v648 = vpop.f32.mrf.mxu0
    %v649 = vadd.f32 0.0, %v648
    %v650 = vpop.f32.mrf.mxu0
    %v651 = vpop.f32.mrf.mxu0
    %v652 = vadd.f32 0.0, %v651
    %v653 = vpop.f32.mrf.mxu0
    %654 = vmatprep.mubr.bf16.mxu0 0
    %655 = vmatmul.mubr.bf16.gmra.mxu0 %v102
    %v656 = vpop.f32.mrf.mxu0
    %v657 = vadd.f32 0.0, %v656
    %v658 = vpop.f32.mrf.mxu0
    %v659 = vpop.f32.mrf.mxu0
    %v660 = vadd.f32 0.0, %v659
    %v661 = vpop.f32.mrf.mxu0
    %662 = vmatprep.mubr.bf16.mxu0 0
    %663 = vmatmul.mubr.bf16.gmra.mxu0 %v103
    %v664 = vpop.f32.mrf.mxu0
    %v665 = vadd.f32 0.0, %v664
    %v666 = vpop.f32.mrf.mxu0
    %v667 = vpop.f32.mrf.mxu0
    %v668 = vadd.f32 0.0, %v667
    %v669 = vpop.f32.mrf.mxu0
    %670 = vmatprep.mubr.bf16.mxu0 0
    %671 = vmatmul.mubr.bf16.gmra.mxu0 %v104
    %v672 = vpop.f32.mrf.mxu0
    %v673 = vadd.f32 0.0, %v672
    %v674 = vpop.f32.mrf.mxu0
    %v675 = vpop.f32.mrf.mxu0
    %v676 = vadd.f32 0.0, %v675
    %v677 = vpop.f32.mrf.mxu0
    %678 = vmatprep.mubr.bf16.mxu0 0
    %679 = vmatmul.mubr.bf16.gmra.mxu0 %v105
    %v680 = vpop.f32.mrf.mxu0
    %v681 = vadd.f32 0.0, %v680
    %v682 = vpop.f32.mrf.mxu0
    %v683 = vpop.f32.mrf.mxu0
    %v684 = vadd.f32 0.0, %v683
    %v685 = vpop.f32.mrf.mxu0
    %686 = vmatprep.mubr.bf16.mxu0 0
    %687 = vmatmul.mubr.bf16.gmra.mxu0 %v106
    %v688 = vpop.f32.mrf.mxu0
    %v689 = vadd.f32 0.0, %v688
    %v690 = vpop.f32.mrf.mxu0
    %v691 = vpop.f32.mrf.mxu0
    %v692 = vadd.f32 0.0, %v691
    %v693 = vpop.f32.mrf.mxu0
    %694 = vdwg.mxu0
    %696 = vset.pattern.permute.xlu0 0
    %697 = vperm.xlu0 %696, %v131
    %v698 = vpop.permute.xlu0 %697
    %701 = vset.pattern.permute.xlu0 0
    %702 = vperm.xlu0 %701, %v132
    %v703 = vpop.permute.xlu0 %702
    %706 = vset.pattern.permute.xlu0 0
    %707 = vperm.xlu0 %706, %v133
    %v708 = vpop.permute.xlu0 %707
    %711 = vset.pattern.permute.xlu0 0
    %712 = vperm.xlu0 %711, %v134
    %v713 = vpop.permute.xlu0 %712
    %716 = vset.pattern.permute.xlu0 0
    %717 = vperm.xlu0 %716, %v135
    %v718 = vpop.permute.xlu0 %717
    %721 = vset.pattern.permute.xlu0 0
    %722 = vperm.xlu0 %721, %v136
    %v723 = vpop.permute.xlu0 %722
    %726 = vset.pattern.permute.xlu0 0
    %727 = vperm.xlu0 %726, %v137
    %v728 = vpop.permute.xlu0 %727
    %731 = vset.pattern.permute.xlu0 0
    %732 = vperm.xlu0 %731, %v138
    %v733 = vpop.permute.xlu0 %732
    %736 = vset.pattern.permute.xlu0 0
    %737 = vperm.xlu0 %736, %v139
    %v738 = vpop.permute.xlu0 %737
    %741 = vset.pattern.permute.xlu0 0
    %742 = vperm.xlu0 %741, %v140
    %v743 = vpop.permute.xlu0 %742
    %746 = vset.pattern.permute.xlu0 0
    %747 = vperm.xlu0 %746, %v141
    %v748 = vpop.permute.xlu0 %747
    %751 = vset.pattern.permute.xlu0 0
    %752 = vperm.xlu0 %751, %v142
    %v753 = vpop.permute.xlu0 %752
    %756 = vset.pattern.permute.xlu0 0
    %757 = vperm.xlu0 %756, %v143
    %v758 = vpop.permute.xlu0 %757
    %761 = vset.pattern.permute.xlu0 0
    %762 = vperm.xlu0 %761, %v144
    %v763 = vpop.permute.xlu0 %762
    %766 = vset.pattern.permute.xlu0 0
    %767 = vperm.xlu0 %766, %v145
    %v768 = vpop.permute.xlu0 %767
    %771 = vset.pattern.permute.xlu0 0
    %772 = vperm.xlu0 %771, %v146
    %v773 = vpop.permute.xlu0 %772
    %v775 = vmul.f32 %v633, %v698
    %v776 = vmul.f32 %v636, %v703
    %v777 = vmul.f32 %v641, %v708
    %v778 = vmul.f32 %v644, %v713
    %v779 = vmul.f32 %v649, %v718
    %v780 = vmul.f32 %v652, %v723
    %v781 = vmul.f32 %v657, %v728
    %v782 = vmul.f32 %v660, %v733
    %v783 = vmul.f32 %v665, %v738
    %v784 = vmul.f32 %v668, %v743
    %v785 = vmul.f32 %v673, %v748
    %v786 = vmul.f32 %v676, %v753
    %v787 = vmul.f32 %v681, %v758
    %v788 = vmul.f32 %v684, %v763
    %v789 = vmul.f32 %v689, %v768
    %v790 = vmul.f32 %v692, %v773
    %v792 = vlaneseq
    %v793 = vshrl.u32 %v792, 7
    %v794 = vsub.s32 0, %v793
    %v795 = vrot.slane %v195, %v794
    %v797 = vadd.f32 %v775, %v795
    %v798 = vadd.f32 %v776, %v795
    %v799 = vadd.f32 %v777, %v795
    %v800 = vadd.f32 %v778, %v795
    %v801 = vadd.f32 %v779, %v795
    %v802 = vadd.f32 %v780, %v795
    %v803 = vadd.f32 %v781, %v795
    %v804 = vadd.f32 %v782, %v795
    %v805 = vadd.f32 %v783, %v795
    %v806 = vadd.f32 %v784, %v795
    %v807 = vadd.f32 %v785, %v795
    %v808 = vadd.f32 %v786, %v795
    %v809 = vadd.f32 %v787, %v795
    %v810 = vadd.f32 %v788, %v795
    %v811 = vadd.f32 %v789, %v795
    %v812 = vadd.f32 %v790, %v795
    %v813 = vmax.f32 %v797, 0.0
    %v814 = vmax.f32 %v798, 0.0
    %v815 = vmax.f32 %v799, 0.0
    %v816 = vmax.f32 %v800, 0.0
    %v817 = vmax.f32 %v801, 0.0
    %v818 = vmax.f32 %v802, 0.0
    %v819 = vmax.f32 %v803, 0.0
    %v820 = vmax.f32 %v804, 0.0
    %v821 = vmax.f32 %v805, 0.0
    %v822 = vmax.f32 %v806, 0.0
    %v823 = vmax.f32 %v807, 0.0
    %v824 = vmax.f32 %v808, 0.0
    %v825 = vmax.f32 %v809, 0.0
    %v826 = vmax.f32 %v810, 0.0
    %v827 = vmax.f32 %v811, 0.0
    %v828 = vmax.f32 %v812, 0.0
    %v829 = vpack.c.bf16 %v814, %v813
    %v830 = vpack.c.bf16 %v816, %v815
    %v831 = vpack.c.bf16 %v818, %v817
    %v832 = vpack.c.bf16 %v820, %v819
    %v833 = vpack.c.bf16 %v822, %v821
    %v834 = vpack.c.bf16 %v824, %v823
    %v835 = vpack.c.bf16 %v826, %v825
    %v836 = vpack.c.bf16 %v828, %v827
    %v837 = vld [vmem:[%s6] sm:$0xf]
    %v838 = vld [vmem:[%s6 + $0x4] sm:$0xf]
    %v839 = vld [vmem:[%s6 + $0x8] sm:$0xf]
    %v840 = vld [vmem:[%s6 + $0xc] sm:$0xf]
    %v841 = vld [vmem:[%s6 + $0x10] sm:$0xf]
    %v842 = vld [vmem:[%s6 + $0x14] sm:$0xf]
    %v843 = vld [vmem:[%s6 + $0x18] sm:$0xf]
    %v844 = vld [vmem:[%s6 + $0x1c] sm:$0xf]
    %v845 = vld [vmem:[%s6 + $0x20] sm:$0xf]
    %v846 = vld [vmem:[%s6 + $0x24] sm:$0xf]
    %v847 = vld [vmem:[%s6 + $0x28] sm:$0xf]
    %v848 = vld [vmem:[%s6 + $0x2c] sm:$0xf]
    %v849 = vld [vmem:[%s6 + $0x30] sm:$0xf]
    %v850 = vld [vmem:[%s6 + $0x34] sm:$0xf]
    %v851 = vld [vmem:[%s6 + $0x38] sm:$0xf]
    %v852 = vld [vmem:[%s6 + $0x3c] sm:$0xf]
    %v853 = vld [vmem:[%s7] sm:$0x1]
    %v870 = vunpack.c.l.b16 %v837
    %v871 = vunpack.c.l.b16 %v838
    %v872 = vunpack.c.l.b16 %v839
    %v873 = vunpack.c.l.b16 %v840
    %v874 = vunpack.c.l.b16 %v841
    %v875 = vunpack.c.l.b16 %v842
    %v876 = vunpack.c.l.b16 %v843
    %v877 = vunpack.c.l.b16 %v844
    %v878 = vunpack.c.l.b16 %v845
    %v879 = vunpack.c.l.b16 %v846
    %v880 = vunpack.c.l.b16 %v847
    %v881 = vunpack.c.l.b16 %v848
    %v882 = vunpack.c.l.b16 %v849
    %v883 = vunpack.c.l.b16 %v850
    %v884 = vunpack.c.l.b16 %v851
    %v885 = vunpack.c.l.b16 %v852
    %v886 = vpack.c.b16 %v871, %v870
    %v887 = vpack.c.b16 %v873, %v872
    %v888 = vpack.c.b16 %v875, %v874
    %v889 = vpack.c.b16 %v877, %v876
    %v890 = vpack.c.b16 %v879, %v878
    %v891 = vpack.c.b16 %v881, %v880
    %v892 = vpack.c.b16 %v883, %v882
    %v893 = vpack.c.b16 %v885, %v884
    %902 = vmatprep.subr.bf16.mxu0 0
    %903 = vmatpush1.bf16.msra.mxu0 %v893
    %904 = vmatprep.subr.bf16.mxu0 0
    %905 = vmatpush1.bf16.msra.mxu0 %v892
    %906 = vmatprep.subr.bf16.mxu0 0
    %907 = vmatpush1.bf16.msra.mxu0 %v891
    %908 = vmatprep.subr.bf16.mxu0 0
    %909 = vmatpush1.bf16.msra.mxu0 %v890
    %910 = vmatprep.subr.bf16.mxu0 0
    %911 = vmatpush1.bf16.msra.mxu0 %v889
    %912 = vmatprep.subr.bf16.mxu0 0
    %913 = vmatpush1.bf16.msra.mxu0 %v888
    %914 = vmatprep.subr.bf16.mxu0 0
    %915 = vmatpush1.bf16.msra.mxu0 %v887
    %916 = vmatprep.subr.bf16.mxu0 0
    %917 = vmatpush1.bf16.msra.mxu0 %v886
    %918 = vmatprep.subr.bf16.mxu0 0
    %919 = vmatpush2.bf16.msra.mxu0 0
    %920 = vmatprep.subr.bf16.mxu0 0
    %921 = vmatpush2.bf16.msra.mxu0 0
    %922 = vmatprep.subr.bf16.mxu0 0
    %923 = vmatpush2.bf16.msra.mxu0 0
    %924 = vmatprep.subr.bf16.mxu0 0
    %925 = vmatpush2.bf16.msra.mxu0 0
    %926 = vmatprep.subr.bf16.mxu0 0
    %927 = vmatpush2.bf16.msra.mxu0 0
    %928 = vmatprep.subr.bf16.mxu0 0
    %929 = vmatpush2.bf16.msra.mxu0 0
    %930 = vmatprep.subr.bf16.mxu0 0
    %931 = vmatpush2.bf16.msra.mxu0 0
    %932 = vmatprep.subr.bf16.mxu0 0
    %933 = vmatpush2.bf16.msra.mxu0 0
    %934 = vmatprep.mubr.bf16.mxu0 0
    %935 = vmatmul.mubr.bf16.gmra.mxu0 %v829
    %v936 = vpop.f32.mrf.mxu0
    %v937 = vadd.f32 0.0, %v936
    %v938 = vpop.f32.mrf.mxu0
    %v939 = vpop.f32.mrf.mxu0
    %v940 = vadd.f32 0.0, %v939
    %v941 = vpop.f32.mrf.mxu0
    %942 = vmatprep.mubr.bf16.mxu0 0
    %943 = vmatmul.mubr.bf16.gmra.mxu0 %v830
    %v944 = vpop.f32.mrf.mxu0
    %v945 = vadd.f32 0.0, %v944
    %v946 = vpop.f32.mrf.mxu0
    %v947 = vpop.f32.mrf.mxu0
    %v948 = vadd.f32 0.0, %v947
    %v949 = vpop.f32.mrf.mxu0
    %950 = vmatprep.mubr.bf16.mxu0 0
    %951 = vmatmul.mubr.bf16.gmra.mxu0 %v831
    %v952 = vpop.f32.mrf.mxu0
    %v953 = vadd.f32 0.0, %v952
    %v954 = vpop.f32.mrf.mxu0
    %v955 = vpop.f32.mrf.mxu0
    %v956 = vadd.f32 0.0, %v955
    %v957 = vpop.f32.mrf.mxu0
    %958 = vmatprep.mubr.bf16.mxu0 0
    %959 = vmatmul.mubr.bf16.gmra.mxu0 %v832
    %v960 = vpop.f32.mrf.mxu0
    %v961 = vadd.f32 0.0, %v960
    %v962 = vpop.f32.mrf.mxu0
    %v963 = vpop.f32.mrf.mxu0
    %v964 = vadd.f32 0.0, %v963
    %v965 = vpop.f32.mrf.mxu0
    %966 = vmatprep.mubr.bf16.mxu0 0
    %967 = vmatmul.mubr.bf16.gmra.mxu0 %v833
    %v968 = vpop.f32.mrf.mxu0
    %v969 = vadd.f32 0.0, %v968
    %v970 = vpop.f32.mrf.mxu0
    %v971 = vpop.f32.mrf.mxu0
    %v972 = vadd.f32 0.0, %v971
    %v973 = vpop.f32.mrf.mxu0
    %974 = vmatprep.mubr.bf16.mxu0 0
    %975 = vmatmul.mubr.bf16.gmra.mxu0 %v834
    %v976 = vpop.f32.mrf.mxu0
    %v977 = vadd.f32 0.0, %v976
    %v978 = vpop.f32.mrf.mxu0
    %v979 = vpop.f32.mrf.mxu0
    %v980 = vadd.f32 0.0, %v979
    %v981 = vpop.f32.mrf.mxu0
    %982 = vmatprep.mubr.bf16.mxu0 0
    %983 = vmatmul.mubr.bf16.gmra.mxu0 %v835
    %v984 = vpop.f32.mrf.mxu0
    %v985 = vadd.f32 0.0, %v984
    %v986 = vpop.f32.mrf.mxu0
    %v987 = vpop.f32.mrf.mxu0
    %v988 = vadd.f32 0.0, %v987
    %v989 = vpop.f32.mrf.mxu0
    %990 = vmatprep.mubr.bf16.mxu0 0
    %991 = vmatmul.mubr.bf16.gmra.mxu0 %v836
    %v992 = vpop.f32.mrf.mxu0
    %v993 = vadd.f32 0.0, %v992
    %v994 = vpop.f32.mrf.mxu0
    %v995 = vpop.f32.mrf.mxu0
    %v996 = vadd.f32 0.0, %v995
    %v997 = vpop.f32.mrf.mxu0
    %998 = vdwg.mxu0
    %v999 = vpack.c.bf16 %v940, %v937
    %v1000 = vpack.c.bf16 %v948, %v945
    %v1001 = vpack.c.bf16 %v956, %v953
    %v1002 = vpack.c.bf16 %v964, %v961
    %v1003 = vpack.c.bf16 %v972, %v969
    %v1004 = vpack.c.bf16 %v980, %v977
    %v1005 = vpack.c.bf16 %v988, %v985
    %v1006 = vpack.c.bf16 %v996, %v993
    %1007 = vmatprep.subr.bf16.mxu0 0
    %1008 = vmatpush1.bf16.msra.mxu0 %v1006
    %1009 = vmatprep.subr.bf16.mxu0 0
    %1010 = vmatpush1.bf16.msra.mxu0 %v1005
    %1011 = vmatprep.subr.bf16.mxu0 0
    %1012 = vmatpush1.bf16.msra.mxu0 %v1004
    %1013 = vmatprep.subr.bf16.mxu0 0
    %1014 = vmatpush1.bf16.msra.mxu0 %v1003
    %1015 = vmatprep.subr.bf16.mxu0 0
    %1016 = vmatpush1.bf16.msra.mxu0 %v1002
    %1017 = vmatprep.subr.bf16.mxu0 0
    %1018 = vmatpush1.bf16.msra.mxu0 %v1001
    %1019 = vmatprep.subr.bf16.mxu0 0
    %1020 = vmatpush1.bf16.msra.mxu0 %v1000
    %1021 = vmatprep.subr.bf16.mxu0 0
    %1022 = vmatpush1.bf16.msra.mxu0 %v999
    %1023 = vmatprep.subr.bf16.mxu0 0
    %1024 = vmatpush2.bf16.msra.mxu0 0
    %1025 = vmatprep.subr.bf16.mxu0 0
    %1026 = vmatpush2.bf16.msra.mxu0 0
    %1027 = vmatprep.subr.bf16.mxu0 0
    %1028 = vmatpush2.bf16.msra.mxu0 0
    %1029 = vmatprep.subr.bf16.mxu0 0
    %1030 = vmatpush2.bf16.msra.mxu0 0
    %1031 = vmatprep.subr.bf16.mxu0 0
    %1032 = vmatpush2.bf16.msra.mxu0 0
    %1033 = vmatprep.subr.bf16.mxu0 0
    %1034 = vmatpush2.bf16.msra.mxu0 0
    %1035 = vmatprep.subr.bf16.mxu0 0
    %1036 = vmatpush2.bf16.msra.mxu0 0
    %1037 = vmatprep.subr.bf16.mxu0 0
    %1038 = vmatpush2.bf16.msra.mxu0 0
    %1039 = vmatprep.mubr.bf16.mxu0 0
    %1040 = vmatmul.mubr.bf16.gmra.mxu0 %v123
    %v1041 = vpop.f32.mrf.mxu0
    %v1042 = vadd.f32 0.0, %v1041
    %v1043 = vpop.f32.mrf.mxu0
    %v1044 = vpop.f32.mrf.mxu0
    %v1045 = vadd.f32 0.0, %v1044
    %v1046 = vpop.f32.mrf.mxu0
    %1047 = vmatprep.mubr.bf16.mxu0 0
    %1048 = vmatmul.mubr.bf16.gmra.mxu0 %v124
    %v1049 = vpop.f32.mrf.mxu0
    %v1050 = vadd.f32 0.0, %v1049
    %v1051 = vpop.f32.mrf.mxu0
    %v1052 = vpop.f32.mrf.mxu0
    %v1053 = vadd.f32 0.0, %v1052
    %v1054 = vpop.f32.mrf.mxu0
    %1055 = vmatprep.mubr.bf16.mxu0 0
    %1056 = vmatmul.mubr.bf16.gmra.mxu0 %v125
    %v1057 = vpop.f32.mrf.mxu0
    %v1058 = vadd.f32 0.0, %v1057
    %v1059 = vpop.f32.mrf.mxu0
    %v1060 = vpop.f32.mrf.mxu0
    %v1061 = vadd.f32 0.0, %v1060
    %v1062 = vpop.f32.mrf.mxu0
    %1063 = vmatprep.mubr.bf16.mxu0 0
    %1064 = vmatmul.mubr.bf16.gmra.mxu0 %v126
    %v1065 = vpop.f32.mrf.mxu0
    %v1066 = vadd.f32 0.0, %v1065
    %v1067 = vpop.f32.mrf.mxu0
    %v1068 = vpop.f32.mrf.mxu0
    %v1069 = vadd.f32 0.0, %v1068
    %v1070 = vpop.f32.mrf.mxu0
    %1071 = vmatprep.mubr.bf16.mxu0 0
    %1072 = vmatmul.mubr.bf16.gmra.mxu0 %v127
    %v1073 = vpop.f32.mrf.mxu0
    %v1074 = vadd.f32 0.0, %v1073
    %v1075 = vpop.f32.mrf.mxu0
    %v1076 = vpop.f32.mrf.mxu0
    %v1077 = vadd.f32 0.0, %v1076
    %v1078 = vpop.f32.mrf.mxu0
    %1079 = vmatprep.mubr.bf16.mxu0 0
    %1080 = vmatmul.mubr.bf16.gmra.mxu0 %v128
    %v1081 = vpop.f32.mrf.mxu0
    %v1082 = vadd.f32 0.0, %v1081
    %v1083 = vpop.f32.mrf.mxu0
    %v1084 = vpop.f32.mrf.mxu0
    %v1085 = vadd.f32 0.0, %v1084
    %v1086 = vpop.f32.mrf.mxu0
    %1087 = vmatprep.mubr.bf16.mxu0 0
    %1088 = vmatmul.mubr.bf16.gmra.mxu0 %v129
    %v1089 = vpop.f32.mrf.mxu0
    %v1090 = vadd.f32 0.0, %v1089
    %v1091 = vpop.f32.mrf.mxu0
    %v1092 = vpop.f32.mrf.mxu0
    %v1093 = vadd.f32 0.0, %v1092
    %v1094 = vpop.f32.mrf.mxu0
    %1095 = vmatprep.mubr.bf16.mxu0 0
    %1096 = vmatmul.mubr.bf16.gmra.mxu0 %v130
    %v1097 = vpop.f32.mrf.mxu0
    %v1098 = vadd.f32 0.0, %v1097
    %v1099 = vpop.f32.mrf.mxu0
    %v1100 = vpop.f32.mrf.mxu0
    %v1101 = vadd.f32 0.0, %v1100
    %v1102 = vpop.f32.mrf.mxu0
    %1103 = vdwg.mxu0
    %v1104 = vmul.f32 %v1042, %v497
    %v1105 = vmul.f32 %v1045, %v502
    %v1106 = vmul.f32 %v1050, %v507
    %v1107 = vmul.f32 %v1053, %v512
    %v1108 = vmul.f32 %v1058, %v517
    %v1109 = vmul.f32 %v1061, %v522
    %v1110 = vmul.f32 %v1066, %v527
    %v1111 = vmul.f32 %v1069, %v532
    %v1112 = vmul.f32 %v1074, %v537
    %v1113 = vmul.f32 %v1077, %v542
    %v1114 = vmul.f32 %v1082, %v547
    %v1115 = vmul.f32 %v1085, %v552
    %v1116 = vmul.f32 %v1090, %v557
    %v1117 = vmul.f32 %v1093, %v562
    %v1118 = vmul.f32 %v1098, %v567
    %v1119 = vmul.f32 %v1101, %v572
    %v1120 = vpack.c.bf16 %v1105, %v1104
    %v1121 = vpack.c.bf16 %v1107, %v1106
    %v1122 = vpack.c.bf16 %v1109, %v1108
    %v1123 = vpack.c.bf16 %v1111, %v1110
    %v1124 = vpack.c.bf16 %v1113, %v1112
    %v1125 = vpack.c.bf16 %v1115, %v1114
    %v1126 = vpack.c.bf16 %v1117, %v1116
    %v1127 = vpack.c.bf16 %v1119, %v1118
    %1128 = vmatprep.subr.bf16.mxu0 0
    %1129 = vmatpush1.bf16.msra.mxu0 %v1127
    %1130 = vmatprep.subr.bf16.mxu0 0
    %1131 = vmatpush1.bf16.msra.mxu0 %v1126
    %1132 = vmatprep.subr.bf16.mxu0 0
    %1133 = vmatpush1.bf16.msra.mxu0 %v1125
    %1134 = vmatprep.subr.bf16.mxu0 0
    %1135 = vmatpush1.bf16.msra.mxu0 %v1124
    %1136 = vmatprep.subr.bf16.mxu0 0
    %1137 = vmatpush1.bf16.msra.mxu0 %v1123
    %1138 = vmatprep.subr.bf16.mxu0 0
    %1139 = vmatpush1.bf16.msra.mxu0 %v1122
    %1140 = vmatprep.subr.bf16.mxu0 0
    %1141 = vmatpush1.bf16.msra.mxu0 %v1121
    %1142 = vmatprep.subr.bf16.mxu0 0
    %1143 = vmatpush1.bf16.msra.mxu0 %v1120
    %1144 = vmatprep.subr.bf16.mxu0 0
    %1145 = vmatpush2.bf16.msra.mxu0 0
    %1146 = vmatprep.subr.bf16.mxu0 0
    %1147 = vmatpush2.bf16.msra.mxu0 0
    %1148 = vmatprep.subr.bf16.mxu0 0
    %1149 = vmatpush2.bf16.msra.mxu0 0
    %1150 = vmatprep.subr.bf16.mxu0 0
    %1151 = vmatpush2.bf16.msra.mxu0 0
    %1152 = vmatprep.subr.bf16.mxu0 0
    %1153 = vmatpush2.bf16.msra.mxu0 0
    %1154 = vmatprep.subr.bf16.mxu0 0
    %1155 = vmatpush2.bf16.msra.mxu0 0
    %1156 = vmatprep.subr.bf16.mxu0 0
    %1157 = vmatpush2.bf16.msra.mxu0 0
    %1158 = vmatprep.subr.bf16.mxu0 0
    %1159 = vmatpush2.bf16.msra.mxu0 0
    %1160 = vmatprep.mubr.bf16.mxu0 0
    %1161 = vmatmul.mubr.bf16.gmra.mxu0 %v99
    %v1162 = vpop.f32.mrf.mxu0
    %v1163 = vadd.f32 0.0, %v1162
    %v1164 = vpop.f32.mrf.mxu0
    %v1165 = vpop.f32.mrf.mxu0
    %v1166 = vadd.f32 0.0, %v1165
    %v1167 = vpop.f32.mrf.mxu0
    %1168 = vmatprep.mubr.bf16.mxu0 0
    %1169 = vmatmul.mubr.bf16.gmra.mxu0 %v100
    %v1170 = vpop.f32.mrf.mxu0
    %v1171 = vadd.f32 0.0, %v1170
    %v1172 = vpop.f32.mrf.mxu0
    %v1173 = vpop.f32.mrf.mxu0
    %v1174 = vadd.f32 0.0, %v1173
    %v1175 = vpop.f32.mrf.mxu0
    %1176 = vmatprep.mubr.bf16.mxu0 0
    %1177 = vmatmul.mubr.bf16.gmra.mxu0 %v101
    %v1178 = vpop.f32.mrf.mxu0
    %v1179 = vadd.f32 0.0, %v1178
    %v1180 = vpop.f32.mrf.mxu0
    %v1181 = vpop.f32.mrf.mxu0
    %v1182 = vadd.f32 0.0, %v1181
    %v1183 = vpop.f32.mrf.mxu0
    %1184 = vmatprep.mubr.bf16.mxu0 0
    %1185 = vmatmul.mubr.bf16.gmra.mxu0 %v102
    %v1186 = vpop.f32.mrf.mxu0
    %v1187 = vadd.f32 0.0, %v1186
    %v1188 = vpop.f32.mrf.mxu0
    %v1189 = vpop.f32.mrf.mxu0
    %v1190 = vadd.f32 0.0, %v1189
    %v1191 = vpop.f32.mrf.mxu0
    %1192 = vmatprep.mubr.bf16.mxu0 0
    %1193 = vmatmul.mubr.bf16.gmra.mxu0 %v103
    %v1194 = vpop.f32.mrf.mxu0
    %v1195 = vadd.f32 0.0, %v1194
    %v1196 = vpop.f32.mrf.mxu0
    %v1197 = vpop.f32.mrf.mxu0
    %v1198 = vadd.f32 0.0, %v1197
    %v1199 = vpop.f32.mrf.mxu0
    %1200 = vmatprep.mubr.bf16.mxu0 0
    %1201 = vmatmul.mubr.bf16.gmra.mxu0 %v104
    %v1202 = vpop.f32.mrf.mxu0
    %v1203 = vadd.f32 0.0, %v1202
    %v1204 = vpop.f32.mrf.mxu0
    %v1205 = vpop.f32.mrf.mxu0
    %v1206 = vadd.f32 0.0, %v1205
    %v1207 = vpop.f32.mrf.mxu0
    %1208 = vmatprep.mubr.bf16.mxu0 0
    %1209 = vmatmul.mubr.bf16.gmra.mxu0 %v105
    %v1210 = vpop.f32.mrf.mxu0
    %v1211 = vadd.f32 0.0, %v1210
    %v1212 = vpop.f32.mrf.mxu0
    %v1213 = vpop.f32.mrf.mxu0
    %v1214 = vadd.f32 0.0, %v1213
    %v1215 = vpop.f32.mrf.mxu0
    %1216 = vmatprep.mubr.bf16.mxu0 0
    %1217 = vmatmul.mubr.bf16.gmra.mxu0 %v106
    %v1218 = vpop.f32.mrf.mxu0
    %v1219 = vadd.f32 0.0, %v1218
    %v1220 = vpop.f32.mrf.mxu0
    %v1221 = vpop.f32.mrf.mxu0
    %v1222 = vadd.f32 0.0, %v1221
    %v1223 = vpop.f32.mrf.mxu0
    %1224 = vdwg.mxu0
    %v1225 = vmul.f32 %v1163, %v698
    %v1226 = vmul.f32 %v1166, %v703
    %v1227 = vmul.f32 %v1171, %v708
    %v1228 = vmul.f32 %v1174, %v713
    %v1229 = vmul.f32 %v1179, %v718
    %v1230 = vmul.f32 %v1182, %v723
    %v1231 = vmul.f32 %v1187, %v728
    %v1232 = vmul.f32 %v1190, %v733
    %v1233 = vmul.f32 %v1195, %v738
    %v1234 = vmul.f32 %v1198, %v743
    %v1235 = vmul.f32 %v1203, %v748
    %v1236 = vmul.f32 %v1206, %v753
    %v1237 = vmul.f32 %v1211, %v758
    %v1238 = vmul.f32 %v1214, %v763
    %v1239 = vmul.f32 %v1219, %v768
    %v1240 = vmul.f32 %v1222, %v773
    %v1242 = vlaneseq
    %v1243 = vshrl.u32 %v1242, 7
    %v1244 = vsub.s32 0, %v1243
    %v1245 = vrot.slane %v853, %v1244
    %v1247 = vadd.f32 %v1225, %v1245
    %v1248 = vadd.f32 %v1226, %v1245
    %v1249 = vadd.f32 %v1227, %v1245
    %v1250 = vadd.f32 %v1228, %v1245
    %v1251 = vadd.f32 %v1229, %v1245
    %v1252 = vadd.f32 %v1230, %v1245
    %v1253 = vadd.f32 %v1231, %v1245
    %v1254 = vadd.f32 %v1232, %v1245
    %v1255 = vadd.f32 %v1233, %v1245
    %v1256 = vadd.f32 %v1234, %v1245
    %v1257 = vadd.f32 %v1235, %v1245
    %v1258 = vadd.f32 %v1236, %v1245
    %v1259 = vadd.f32 %v1237, %v1245
    %v1260 = vadd.f32 %v1238, %v1245
    %v1261 = vadd.f32 %v1239, %v1245
    %v1262 = vadd.f32 %v1240, %v1245
    %v1263 = vmax.f32 %v1247, 0.0
    %v1264 = vmax.f32 %v1248, 0.0
    %v1265 = vmax.f32 %v1249, 0.0
    %v1266 = vmax.f32 %v1250, 0.0
    %v1267 = vmax.f32 %v1251, 0.0
    %v1268 = vmax.f32 %v1252, 0.0
    %v1269 = vmax.f32 %v1253, 0.0
    %v1270 = vmax.f32 %v1254, 0.0
    %v1271 = vmax.f32 %v1255, 0.0
    %v1272 = vmax.f32 %v1256, 0.0
    %v1273 = vmax.f32 %v1257, 0.0
    %v1274 = vmax.f32 %v1258, 0.0
    %v1275 = vmax.f32 %v1259, 0.0
    %v1276 = vmax.f32 %v1260, 0.0
    %v1277 = vmax.f32 %v1261, 0.0
    %v1278 = vmax.f32 %v1262, 0.0
    %v1279 = vpack.c.bf16 %v1264, %v1263
    %v1280 = vpack.c.bf16 %v1266, %v1265
    %v1281 = vpack.c.bf16 %v1268, %v1267
    %v1282 = vpack.c.bf16 %v1270, %v1269
    %v1283 = vpack.c.bf16 %v1272, %v1271
    %v1284 = vpack.c.bf16 %v1274, %v1273
    %v1285 = vpack.c.bf16 %v1276, %v1275
    %v1286 = vpack.c.bf16 %v1278, %v1277
    %v1287 = vld [vmem:[#allocation2] sm:$0xf]
    %v1288 = vld [vmem:[#allocation2 + $0x4] sm:$0xf]
    %v1289 = vld [vmem:[#allocation2 + $0x8] sm:$0xf]
    %v1290 = vld [vmem:[#allocation2 + $0xc] sm:$0xf]
    %v1291 = vld [vmem:[#allocation2 + $0x10] sm:$0xf]
    %v1292 = vld [vmem:[#allocation2 + $0x14] sm:$0xf]
    %v1293 = vld [vmem:[#allocation2 + $0x18] sm:$0xf]
    %v1294 = vld [vmem:[#allocation2 + $0x1c] sm:$0xf]
    %v1295 = vld [vmem:[#allocation2 + $0x20] sm:$0xf]
    %v1296 = vld [vmem:[#allocation2 + $0x24] sm:$0xf]
    %v1297 = vld [vmem:[#allocation2 + $0x28] sm:$0xf]
    %v1298 = vld [vmem:[#allocation2 + $0x2c] sm:$0xf]
    %v1299 = vld [vmem:[#allocation2 + $0x30] sm:$0xf]
    %v1300 = vld [vmem:[#allocation2 + $0x34] sm:$0xf]
    %v1301 = vld [vmem:[#allocation2 + $0x38] sm:$0xf]
    %v1302 = vld [vmem:[#allocation2 + $0x3c] sm:$0xf]
    %v1303 = vld [vmem:[%s9] sm:$0x1]
    %v1320 = vunpack.c.l.b16 %v1287
    %v1321 = vunpack.c.l.b16 %v1288
    %v1322 = vunpack.c.l.b16 %v1289
    %v1323 = vunpack.c.l.b16 %v1290
    %v1324 = vunpack.c.l.b16 %v1291
    %v1325 = vunpack.c.l.b16 %v1292
    %v1326 = vunpack.c.l.b16 %v1293
    %v1327 = vunpack.c.l.b16 %v1294
    %v1328 = vunpack.c.l.b16 %v1295
    %v1329 = vunpack.c.l.b16 %v1296
    %v1330 = vunpack.c.l.b16 %v1297
    %v1331 = vunpack.c.l.b16 %v1298
    %v1332 = vunpack.c.l.b16 %v1299
    %v1333 = vunpack.c.l.b16 %v1300
    %v1334 = vunpack.c.l.b16 %v1301
    %v1335 = vunpack.c.l.b16 %v1302
    %v1336 = vpack.c.b16 %v1321, %v1320
    %v1337 = vpack.c.b16 %v1323, %v1322
    %v1338 = vpack.c.b16 %v1325, %v1324
    %v1339 = vpack.c.b16 %v1327, %v1326
    %v1340 = vpack.c.b16 %v1329, %v1328
    %v1341 = vpack.c.b16 %v1331, %v1330
    %v1342 = vpack.c.b16 %v1333, %v1332
    %v1343 = vpack.c.b16 %v1335, %v1334
    %1352 = vmatprep.subr.bf16.mxu0 0
    %1353 = vmatpush1.bf16.msra.mxu0 %v1343
    %1354 = vmatprep.subr.bf16.mxu0 0
    %1355 = vmatpush1.bf16.msra.mxu0 %v1342
    %1356 = vmatprep.subr.bf16.mxu0 0
    %1357 = vmatpush1.bf16.msra.mxu0 %v1341
    %1358 = vmatprep.subr.bf16.mxu0 0
    %1359 = vmatpush1.bf16.msra.mxu0 %v1340
    %1360 = vmatprep.subr.bf16.mxu0 0
    %1361 = vmatpush1.bf16.msra.mxu0 %v1339
    %1362 = vmatprep.subr.bf16.mxu0 0
    %1363 = vmatpush1.bf16.msra.mxu0 %v1338
    %1364 = vmatprep.subr.bf16.mxu0 0
    %1365 = vmatpush1.bf16.msra.mxu0 %v1337
    %1366 = vmatprep.subr.bf16.mxu0 0
    %1367 = vmatpush1.bf16.msra.mxu0 %v1336
    %1368 = vmatprep.subr.bf16.mxu0 0
    %1369 = vmatpush2.bf16.msra.mxu0 0
    %1370 = vmatprep.subr.bf16.mxu0 0
    %1371 = vmatpush2.bf16.msra.mxu0 0
    %1372 = vmatprep.subr.bf16.mxu0 0
    %1373 = vmatpush2.bf16.msra.mxu0 0
    %1374 = vmatprep.subr.bf16.mxu0 0
    %1375 = vmatpush2.bf16.msra.mxu0 0
    %1376 = vmatprep.subr.bf16.mxu0 0
    %1377 = vmatpush2.bf16.msra.mxu0 0
    %1378 = vmatprep.subr.bf16.mxu0 0
    %1379 = vmatpush2.bf16.msra.mxu0 0
    %1380 = vmatprep.subr.bf16.mxu0 0
    %1381 = vmatpush2.bf16.msra.mxu0 0
    %1382 = vmatprep.subr.bf16.mxu0 0
    %1383 = vmatpush2.bf16.msra.mxu0 0
    %1384 = vmatprep.mubr.bf16.mxu0 0
    %1385 = vmatmul.mubr.bf16.gmra.mxu0 %v1279
    %v1386 = vpop.f32.mrf.mxu0
    %v1387 = vadd.f32 0.0, %v1386
    %v1388 = vpop.f32.mrf.mxu0
    %v1389 = vpop.f32.mrf.mxu0
    %v1390 = vadd.f32 0.0, %v1389
    %v1391 = vpop.f32.mrf.mxu0
    %1392 = vmatprep.mubr.bf16.mxu0 0
    %1393 = vmatmul.mubr.bf16.gmra.mxu0 %v1280
    %v1394 = vpop.f32.mrf.mxu0
    %v1395 = vadd.f32 0.0, %v1394
    %v1396 = vpop.f32.mrf.mxu0
    %v1397 = vpop.f32.mrf.mxu0
    %v1398 = vadd.f32 0.0, %v1397
    %v1399 = vpop.f32.mrf.mxu0
    %1400 = vmatprep.mubr.bf16.mxu0 0
    %1401 = vmatmul.mubr.bf16.gmra.mxu0 %v1281
    %v1402 = vpop.f32.mrf.mxu0
    %v1403 = vadd.f32 0.0, %v1402
    %v1404 = vpop.f32.mrf.mxu0
    %v1405 = vpop.f32.mrf.mxu0
    %v1406 = vadd.f32 0.0, %v1405
    %v1407 = vpop.f32.mrf.mxu0
    %1408 = vmatprep.mubr.bf16.mxu0 0
    %1409 = vmatmul.mubr.bf16.gmra.mxu0 %v1282
    %v1410 = vpop.f32.mrf.mxu0
    %v1411 = vadd.f32 0.0, %v1410
    %v1412 = vpop.f32.mrf.mxu0
    %v1413 = vpop.f32.mrf.mxu0
    %v1414 = vadd.f32 0.0, %v1413
    %v1415 = vpop.f32.mrf.mxu0
    %1416 = vmatprep.mubr.bf16.mxu0 0
    %1417 = vmatmul.mubr.bf16.gmra.mxu0 %v1283
    %v1418 = vpop.f32.mrf.mxu0
    %v1419 = vadd.f32 0.0, %v1418
    %v1420 = vpop.f32.mrf.mxu0
    %v1421 = vpop.f32.mrf.mxu0
    %v1422 = vadd.f32 0.0, %v1421
    %v1423 = vpop.f32.mrf.mxu0
    %1424 = vmatprep.mubr.bf16.mxu0 0
    %1425 = vmatmul.mubr.bf16.gmra.mxu0 %v1284
    %v1426 = vpop.f32.mrf.mxu0
    %v1427 = vadd.f32 0.0, %v1426
    %v1428 = vpop.f32.mrf.mxu0
    %v1429 = vpop.f32.mrf.mxu0
    %v1430 = vadd.f32 0.0, %v1429
    %v1431 = vpop.f32.mrf.mxu0
    %1432 = vmatprep.mubr.bf16.mxu0 0
    %1433 = vmatmul.mubr.bf16.gmra.mxu0 %v1285
    %v1434 = vpop.f32.mrf.mxu0
    %v1435 = vadd.f32 0.0, %v1434
    %v1436 = vpop.f32.mrf.mxu0
    %v1437 = vpop.f32.mrf.mxu0
    %v1438 = vadd.f32 0.0, %v1437
    %v1439 = vpop.f32.mrf.mxu0
    %1440 = vmatprep.mubr.bf16.mxu0 0
    %1441 = vmatmul.mubr.bf16.gmra.mxu0 %v1286
    %v1442 = vpop.f32.mrf.mxu0
    %v1443 = vadd.f32 0.0, %v1442
    %v1444 = vpop.f32.mrf.mxu0
    %v1445 = vpop.f32.mrf.mxu0
    %v1446 = vadd.f32 0.0, %v1445
    %v1447 = vpop.f32.mrf.mxu0
    %1448 = vdwg.mxu0
    %v1449 = vpack.c.bf16 %v1390, %v1387
    %v1450 = vpack.c.bf16 %v1398, %v1395
    %v1451 = vpack.c.bf16 %v1406, %v1403
    %v1452 = vpack.c.bf16 %v1414, %v1411
    %v1453 = vpack.c.bf16 %v1422, %v1419
    %v1454 = vpack.c.bf16 %v1430, %v1427
    %v1455 = vpack.c.bf16 %v1438, %v1435
    %v1456 = vpack.c.bf16 %v1446, %v1443
    %1457 = vmatprep.subr.bf16.mxu0 0
    %1458 = vmatpush1.bf16.msra.mxu0 %v1456
    %1459 = vmatprep.subr.bf16.mxu0 0
    %1460 = vmatpush1.bf16.msra.mxu0 %v1455
    %1461 = vmatprep.subr.bf16.mxu0 0
    %1462 = vmatpush1.bf16.msra.mxu0 %v1454
    %1463 = vmatprep.subr.bf16.mxu0 0
    %1464 = vmatpush1.bf16.msra.mxu0 %v1453
    %1465 = vmatprep.subr.bf16.mxu0 0
    %1466 = vmatpush1.bf16.msra.mxu0 %v1452
    %1467 = vmatprep.subr.bf16.mxu0 0
    %1468 = vmatpush1.bf16.msra.mxu0 %v1451
    %1469 = vmatprep.subr.bf16.mxu0 0
    %1470 = vmatpush1.bf16.msra.mxu0 %v1450
    %1471 = vmatprep.subr.bf16.mxu0 0
    %1472 = vmatpush1.bf16.msra.mxu0 %v1449
    %1473 = vmatprep.subr.bf16.mxu0 0
    %1474 = vmatpush2.bf16.msra.mxu0 0
    %1475 = vmatprep.subr.bf16.mxu0 0
    %1476 = vmatpush2.bf16.msra.mxu0 0
    %1477 = vmatprep.subr.bf16.mxu0 0
    %1478 = vmatpush2.bf16.msra.mxu0 0
    %1479 = vmatprep.subr.bf16.mxu0 0
    %1480 = vmatpush2.bf16.msra.mxu0 0
    %1481 = vmatprep.subr.bf16.mxu0 0
    %1482 = vmatpush2.bf16.msra.mxu0 0
    %1483 = vmatprep.subr.bf16.mxu0 0
    %1484 = vmatpush2.bf16.msra.mxu0 0
    %1485 = vmatprep.subr.bf16.mxu0 0
    %1486 = vmatpush2.bf16.msra.mxu0 0
    %1487 = vmatprep.subr.bf16.mxu0 0
    %1488 = vmatpush2.bf16.msra.mxu0 0
    %1489 = vmatprep.mubr.bf16.mxu0 0
    %1490 = vmatmul.mubr.bf16.gmra.mxu0 %v123
    %v1491 = vpop.f32.mrf.mxu0
    %v1492 = vadd.f32 0.0, %v1491
    %v1493 = vpop.f32.mrf.mxu0
    %v1494 = vpop.f32.mrf.mxu0
    %v1495 = vadd.f32 0.0, %v1494
    %v1496 = vpop.f32.mrf.mxu0
    %1497 = vmatprep.mubr.bf16.mxu0 0
    %1498 = vmatmul.mubr.bf16.gmra.mxu0 %v124
    %v1499 = vpop.f32.mrf.mxu0
    %v1500 = vadd.f32 0.0, %v1499
    %v1501 = vpop.f32.mrf.mxu0
    %v1502 = vpop.f32.mrf.mxu0
    %v1503 = vadd.f32 0.0, %v1502
    %v1504 = vpop.f32.mrf.mxu0
    %1505 = vmatprep.mubr.bf16.mxu0 0
    %1506 = vmatmul.mubr.bf16.gmra.mxu0 %v125
    %v1507 = vpop.f32.mrf.mxu0
    %v1508 = vadd.f32 0.0, %v1507
    %v1509 = vpop.f32.mrf.mxu0
    %v1510 = vpop.f32.mrf.mxu0
    %v1511 = vadd.f32 0.0, %v1510
    %v1512 = vpop.f32.mrf.mxu0
    %1513 = vmatprep.mubr.bf16.mxu0 0
    %1514 = vmatmul.mubr.bf16.gmra.mxu0 %v126
    %v1515 = vpop.f32.mrf.mxu0
    %v1516 = vadd.f32 0.0, %v1515
    %v1517 = vpop.f32.mrf.mxu0
    %v1518 = vpop.f32.mrf.mxu0
    %v1519 = vadd.f32 0.0, %v1518
    %v1520 = vpop.f32.mrf.mxu0
    %1521 = vmatprep.mubr.bf16.mxu0 0
    %1522 = vmatmul.mubr.bf16.gmra.mxu0 %v127
    %v1523 = vpop.f32.mrf.mxu0
    %v1524 = vadd.f32 0.0, %v1523
    %v1525 = vpop.f32.mrf.mxu0
    %v1526 = vpop.f32.mrf.mxu0
    %v1527 = vadd.f32 0.0, %v1526
    %v1528 = vpop.f32.mrf.mxu0
    %1529 = vmatprep.mubr.bf16.mxu0 0
    %1530 = vmatmul.mubr.bf16.gmra.mxu0 %v128
    %v1531 = vpop.f32.mrf.mxu0
    %v1532 = vadd.f32 0.0, %v1531
    %v1533 = vpop.f32.mrf.mxu0
    %v1534 = vpop.f32.mrf.mxu0
    %v1535 = vadd.f32 0.0, %v1534
    %v1536 = vpop.f32.mrf.mxu0
    %1537 = vmatprep.mubr.bf16.mxu0 0
    %1538 = vmatmul.mubr.bf16.gmra.mxu0 %v129
    %v1539 = vpop.f32.mrf.mxu0
    %v1540 = vadd.f32 0.0, %v1539
    %v1541 = vpop.f32.mrf.mxu0
    %v1542 = vpop.f32.mrf.mxu0
    %v1543 = vadd.f32 0.0, %v1542
    %v1544 = vpop.f32.mrf.mxu0
    %1545 = vmatprep.mubr.bf16.mxu0 0
    %1546 = vmatmul.mubr.bf16.gmra.mxu0 %v130
    %v1547 = vpop.f32.mrf.mxu0
    %v1548 = vadd.f32 0.0, %v1547
    %v1549 = vpop.f32.mrf.mxu0
    %v1550 = vpop.f32.mrf.mxu0
    %v1551 = vadd.f32 0.0, %v1550
    %v1552 = vpop.f32.mrf.mxu0
    %1553 = vdwg.mxu0
    %v1554 = vmul.f32 %v1492, %v497
    %v1555 = vmul.f32 %v1495, %v502
    %v1556 = vmul.f32 %v1500, %v507
    %v1557 = vmul.f32 %v1503, %v512
    %v1558 = vmul.f32 %v1508, %v517
    %v1559 = vmul.f32 %v1511, %v522
    %v1560 = vmul.f32 %v1516, %v527
    %v1561 = vmul.f32 %v1519, %v532
    %v1562 = vmul.f32 %v1524, %v537
    %v1563 = vmul.f32 %v1527, %v542
    %v1564 = vmul.f32 %v1532, %v547
    %v1565 = vmul.f32 %v1535, %v552
    %v1566 = vmul.f32 %v1540, %v557
    %v1567 = vmul.f32 %v1543, %v562
    %v1568 = vmul.f32 %v1548, %v567
    %v1569 = vmul.f32 %v1551, %v572
    %v1570 = vpack.c.bf16 %v1555, %v1554
    %v1571 = vpack.c.bf16 %v1557, %v1556
    %v1572 = vpack.c.bf16 %v1559, %v1558
    %v1573 = vpack.c.bf16 %v1561, %v1560
    %v1574 = vpack.c.bf16 %v1563, %v1562
    %v1575 = vpack.c.bf16 %v1565, %v1564
    %v1576 = vpack.c.bf16 %v1567, %v1566
    %v1577 = vpack.c.bf16 %v1569, %v1568
    %1578 = vmatprep.subr.bf16.mxu0 0
    %1579 = vmatpush1.bf16.msra.mxu0 %v1577
    %1580 = vmatprep.subr.bf16.mxu0 0
    %1581 = vmatpush1.bf16.msra.mxu0 %v1576
    %1582 = vmatprep.subr.bf16.mxu0 0
    %1583 = vmatpush1.bf16.msra.mxu0 %v1575
    %1584 = vmatprep.subr.bf16.mxu0 0
    %1585 = vmatpush1.bf16.msra.mxu0 %v1574
    %1586 = vmatprep.subr.bf16.mxu0 0
    %1587 = vmatpush1.bf16.msra.mxu0 %v1573
    %1588 = vmatprep.subr.bf16.mxu0 0
    %1589 = vmatpush1.bf16.msra.mxu0 %v1572
    %1590 = vmatprep.subr.bf16.mxu0 0
    %1591 = vmatpush1.bf16.msra.mxu0 %v1571
    %1592 = vmatprep.subr.bf16.mxu0 0
    %1593 = vmatpush1.bf16.msra.mxu0 %v1570
    %1594 = vmatprep.subr.bf16.mxu0 0
    %1595 = vmatpush2.bf16.msra.mxu0 0
    %1596 = vmatprep.subr.bf16.mxu0 0
    %1597 = vmatpush2.bf16.msra.mxu0 0
    %1598 = vmatprep.subr.bf16.mxu0 0
    %1599 = vmatpush2.bf16.msra.mxu0 0
    %1600 = vmatprep.subr.bf16.mxu0 0
    %1601 = vmatpush2.bf16.msra.mxu0 0
    %1602 = vmatprep.subr.bf16.mxu0 0
    %1603 = vmatpush2.bf16.msra.mxu0 0
    %1604 = vmatprep.subr.bf16.mxu0 0
    %1605 = vmatpush2.bf16.msra.mxu0 0
    %1606 = vmatprep.subr.bf16.mxu0 0
    %1607 = vmatpush2.bf16.msra.mxu0 0
    %1608 = vmatprep.subr.bf16.mxu0 0
    %1609 = vmatpush2.bf16.msra.mxu0 0
    %1610 = vmatprep.mubr.bf16.mxu0 0
    %1611 = vmatmul.mubr.bf16.gmra.mxu0 %v99
    %v1612 = vpop.f32.mrf.mxu0
    %v1613 = vadd.f32 0.0, %v1612
    %v1614 = vpop.f32.mrf.mxu0
    %v1615 = vpop.f32.mrf.mxu0
    %v1616 = vadd.f32 0.0, %v1615
    %v1617 = vpop.f32.mrf.mxu0
    %1618 = vmatprep.mubr.bf16.mxu0 0
    %1619 = vmatmul.mubr.bf16.gmra.mxu0 %v100
    %v1620 = vpop.f32.mrf.mxu0
    %v1621 = vadd.f32 0.0, %v1620
    %v1622 = vpop.f32.mrf.mxu0
    %v1623 = vpop.f32.mrf.mxu0
    %v1624 = vadd.f32 0.0, %v1623
    %v1625 = vpop.f32.mrf.mxu0
    %1626 = vmatprep.mubr.bf16.mxu0 0
    %1627 = vmatmul.mubr.bf16.gmra.mxu0 %v101
    %v1628 = vpop.f32.mrf.mxu0
    %v1629 = vadd.f32 0.0, %v1628
    %v1630 = vpop.f32.mrf.mxu0
    %v1631 = vpop.f32.mrf.mxu0
    %v1632 = vadd.f32 0.0, %v1631
    %v1633 = vpop.f32.mrf.mxu0
    %1634 = vmatprep.mubr.bf16.mxu0 0
    %1635 = vmatmul.mubr.bf16.gmra.mxu0 %v102
    %v1636 = vpop.f32.mrf.mxu0
    %v1637 = vadd.f32 0.0, %v1636
    %v1638 = vpop.f32.mrf.mxu0
    %v1639 = vpop.f32.mrf.mxu0
    %v1640 = vadd.f32 0.0, %v1639
    %v1641 = vpop.f32.mrf.mxu0
    %1642 = vmatprep.mubr.bf16.mxu0 0
    %1643 = vmatmul.mubr.bf16.gmra.mxu0 %v103
    %v1644 = vpop.f32.mrf.mxu0
    %v1645 = vadd.f32 0.0, %v1644
    %v1646 = vpop.f32.mrf.mxu0
    %v1647 = vpop.f32.mrf.mxu0
    %v1648 = vadd.f32 0.0, %v1647
    %v1649 = vpop.f32.mrf.mxu0
    %1650 = vmatprep.mubr.bf16.mxu0 0
    %1651 = vmatmul.mubr.bf16.gmra.mxu0 %v104
    %v1652 = vpop.f32.mrf.mxu0
    %v1653 = vadd.f32 0.0, %v1652
    %v1654 = vpop.f32.mrf.mxu0
    %v1655 = vpop.f32.mrf.mxu0
    %v1656 = vadd.f32 0.0, %v1655
    %v1657 = vpop.f32.mrf.mxu0
    %1658 = vmatprep.mubr.bf16.mxu0 0
    %1659 = vmatmul.mubr.bf16.gmra.mxu0 %v105
    %v1660 = vpop.f32.mrf.mxu0
    %v1661 = vadd.f32 0.0, %v1660
    %v1662 = vpop.f32.mrf.mxu0
    %v1663 = vpop.f32.mrf.mxu0
    %v1664 = vadd.f32 0.0, %v1663
    %v1665 = vpop.f32.mrf.mxu0
    %1666 = vmatprep.mubr.bf16.mxu0 0
    %1667 = vmatmul.mubr.bf16.gmra.mxu0 %v106
    %v1668 = vpop.f32.mrf.mxu0
    %v1669 = vadd.f32 0.0, %v1668
    %v1670 = vpop.f32.mrf.mxu0
    %v1671 = vpop.f32.mrf.mxu0
    %v1672 = vadd.f32 0.0, %v1671
    %v1673 = vpop.f32.mrf.mxu0
    %1674 = vdwg.mxu0
    %v1675 = vmul.f32 %v1613, %v698
    %v1676 = vmul.f32 %v1616, %v703
    %v1677 = vmul.f32 %v1621, %v708
    %v1678 = vmul.f32 %v1624, %v713
    %v1679 = vmul.f32 %v1629, %v718
    %v1680 = vmul.f32 %v1632, %v723
    %v1681 = vmul.f32 %v1637, %v728
    %v1682 = vmul.f32 %v1640, %v733
    %v1683 = vmul.f32 %v1645, %v738
    %v1684 = vmul.f32 %v1648, %v743
    %v1685 = vmul.f32 %v1653, %v748
    %v1686 = vmul.f32 %v1656, %v753
    %v1687 = vmul.f32 %v1661, %v758
    %v1688 = vmul.f32 %v1664, %v763
    %v1689 = vmul.f32 %v1669, %v768
    %v1690 = vmul.f32 %v1672, %v773
    %v1692 = vlaneseq
    %v1693 = vshrl.u32 %v1692, 7
    %v1694 = vsub.s32 0, %v1693
    %v1695 = vrot.slane %v1303, %v1694
    %v1697 = vadd.f32 %v1675, %v1695
    %v1698 = vadd.f32 %v1676, %v1695
    %v1699 = vadd.f32 %v1677, %v1695
    %v1700 = vadd.f32 %v1678, %v1695
    %v1701 = vadd.f32 %v1679, %v1695
    %v1702 = vadd.f32 %v1680, %v1695
    %v1703 = vadd.f32 %v1681, %v1695
    %v1704 = vadd.f32 %v1682, %v1695
    %v1705 = vadd.f32 %v1683, %v1695
    %v1706 = vadd.f32 %v1684, %v1695
    %v1707 = vadd.f32 %v1685, %v1695
    %v1708 = vadd.f32 %v1686, %v1695
    %v1709 = vadd.f32 %v1687, %v1695
    %v1710 = vadd.f32 %v1688, %v1695
    %v1711 = vadd.f32 %v1689, %v1695
    %v1712 = vadd.f32 %v1690, %v1695
    %1713 = vst [vmem:[#allocation5] sm:$0xff] %v1697
    %1714 = vst [vmem:[#allocation5 + $0x8] sm:$0xff] %v1698
    %1715 = vst [vmem:[#allocation5 + $0x10] sm:$0xff] %v1699
    %1716 = vst [vmem:[#allocation5 + $0x18] sm:$0xff] %v1700
    %1717 = vst [vmem:[#allocation5 + $0x20] sm:$0xff] %v1701
    %1718 = vst [vmem:[#allocation5 + $0x28] sm:$0xff] %v1702
    %1719 = vst [vmem:[#allocation5 + $0x30] sm:$0xff] %v1703
    %1720 = vst [vmem:[#allocation5 + $0x38] sm:$0xff] %v1704
    %1721 = vst [vmem:[#allocation5 + $0x40] sm:$0xff] %v1705
    %1722 = vst [vmem:[#allocation5 + $0x48] sm:$0xff] %v1706
    %1723 = vst [vmem:[#allocation5 + $0x50] sm:$0xff] %v1707
    %1724 = vst [vmem:[#allocation5 + $0x58] sm:$0xff] %v1708
    %1725 = vst [vmem:[#allocation5 + $0x60] sm:$0xff] %v1709
    %1726 = vst [vmem:[#allocation5 + $0x68] sm:$0xff] %v1710
    %1727 = vst [vmem:[#allocation5 + $0x70] sm:$0xff] %v1711
    %1728 = vst [vmem:[#allocation5 + $0x78] sm:$0xff] %v1712
    // Predicated region
    $region46: #{tpu_custom_call.1} parent=1 // pred_check
      _
    $region47: #{tpu_custom_call.1} parent=1 // pred_check_branch
      %1730 = sbr.rel (0) target = $region49
    $region48: #{tpu_custom_call.1} parent=1 // pred_region
      %s1732 = ssub.s32 2048, 2048
      %1733 = vsyncadd [#allocation4], %s1732
      %s1734 = sshll.u32 [#allocation5], 4
      %s1735 = int_to_ptr.vmem [resolvable:$true] %s1734
      %1740 = dma.vmem_to_hbm [thread:$0]  %s1735, 2048, %s10, [#allocation4], 128, 128, 8
    $region49: #{tpu_custom_call.1} parent=1 // pred_fallthru
      _
    // Predicated region
    $region50: #{tpu_custom_call.1} parent=1 // pred_check
      _
    $region51: #{tpu_custom_call.1} parent=1 // pred_check_branch
      %1742 = sbr.rel (0) target = $region53
    $region52: #{tpu_custom_call.1} parent=1 // pred_region
      %1743 = dma.done [#allocation4], 2048
    $region53: #{tpu_custom_call.1} parent=1 // pred_fallthru
      _
    %1744 = vsyncpa [#allocation3], 1
    %1745 = vsyncpa [#allocation4], 1

</llo_original>
